<compile_context>
chip_gen: v7x
topology: tpu7x:2x2x1
jax: 0.10.0
libtpu: 0.0.40
codegen_flags: <defaults>
</compile_context>

<pallas_src>
import functools

import jax
import jax.numpy as jnp
from jax import lax
from jax.experimental import pallas as pl
from jax.experimental.pallas import tpu as pltpu


# ---------------------------------------------------------------------------
# Kernel 1 & 3: tiled dense layer  y = x @ W + b
# ---------------------------------------------------------------------------
def _linear_kernel(x_ref, w_ref, b_ref, o_ref, acc_ref):
    k = pl.program_id(2)

    @pl.when(k == 0)
    def _():
        acc_ref[...] = jnp.zeros_like(acc_ref)

    # Native-dtype operands into the MXU, f32 accumulation.
    acc_ref[...] += jnp.dot(
        x_ref[...], w_ref[...], preferred_element_type=jnp.float32
    )

    @pl.when(k == pl.num_programs(2) - 1)
    def _():
        # Bias added once, only in the final K step (off the reduction path).
        o_ref[...] = (acc_ref[...] + b_ref[...].astype(jnp.float32)).astype(o_ref.dtype)


def _pick_k_tile(K, target=512, align=128):
    """Largest divisor of K that is <= target and 128-aligned; else K itself."""
    if K <= target:
        return K
    for t in range(target, 0, -1):
        if K % t == 0 and t % align == 0:
            return t
    return K


def pallas_linear(x2d, w, b, *, tm_target=256, tn_target=512):
    """y = x2d @ w + b with a tiled, double-buffered Pallas matmul."""
    M, K = x2d.shape
    Kw, N = w.shape
    assert K == Kw

    # M / N tiles: full extent when small, otherwise MXU-friendly sizes
    # (tm_target multiple of 8, tn_target multiple of 256 -> fills v6e/v7x
    # 2x256 MXU; boundary blocks are handled by cdiv + masked writeback).
    tm = M if M <= tm_target else tm_target
    tn = N if N <= tn_target else tn_target
    # K tile must divide K exactly (reduction axis).
    tk = _pick_k_tile(K)

    grid = (pl.cdiv(M, tm), pl.cdiv(N, tn), K // tk)

    return pl.pallas_call(
        _linear_kernel,
        out_shape=jax.ShapeDtypeStruct((M, N), x2d.dtype),
        grid=grid,
        in_specs=[
            pl.BlockSpec((tm, tk), lambda i, j, k: (i, k)),
            pl.BlockSpec((tk, tn), lambda i, j, k: (k, j)),
            pl.BlockSpec((1, tn), lambda i, j, k: (0, j)),
        ],
        out_specs=pl.BlockSpec((tm, tn), lambda i, j, k: (i, j)),
        scratch_shapes=[pltpu.VMEM((tm, tn), jnp.float32)],
        compiler_params=pltpu.CompilerParams(
            dimension_semantics=("parallel", "parallel", "arbitrary")
        ),
    )(x2d, w, b.reshape(1, N))


# ---------------------------------------------------------------------------
# Kernel 2: per-batch attention, all heads per grid step.
#   Reads the (1, N, 3*dim) qkv slab, writes (1, N, dim) context (lane-dense).
#   qkv column layout is (3, H, Dh): q_h at h*Dh, k_h at dim + h*Dh,
#   v_h at 2*dim + h*Dh — exactly the PyTorch reshape(., 3, H, Dh) layout.
# ---------------------------------------------------------------------------
def _attn_kernel(qkv_ref, o_ref, *, n_heads, head_dim, scale):
    dim = n_heads * head_dim
    heads_out = []
    for h in range(n_heads):  # static, unrolled head loop
        q = qkv_ref[0, :, h * head_dim:(h + 1) * head_dim] * scale   # (N, Dh)
        k = qkv_ref[0, :, dim + h * head_dim: dim + (h + 1) * head_dim]
        v = qkv_ref[0, :, 2 * dim + h * head_dim: 2 * dim + (h + 1) * head_dim]

        # NT contraction on the MXU (no explicit K transpose), f32 accumulate.
        s = lax.dot_general(
            q, k, (((1,), (1,)), ((), ())), preferred_element_type=jnp.float32
        )                                                            # (N, N)
        s = s - jnp.max(s, axis=-1, keepdims=True)
        p = jnp.exp(s)
        row_sum = jnp.sum(p, axis=-1, keepdims=True)                 # (N, 1)

        # Normalize after the PV matmul: O(N*Dh) multiplies with an EUP
        # reciprocal instead of O(N*N) divides on the score matrix.
        ctx = jnp.dot(p.astype(v.dtype), v, preferred_element_type=jnp.float32)
        heads_out.append(ctx * pl.reciprocal(row_sum, approx=True))  # (N, Dh)

    # Single full-width (N, dim) store -> lane-dense writeback, and the
    # head-concat order matches torch's transpose(1,2).flatten(2).
    o_ref[0] = jnp.concatenate(heads_out, axis=-1).astype(o_ref.dtype)


def pallas_attention_core(qkv3, n_heads, head_dim, scale):
    """qkv3: (B, N, 3*dim) -> context (B, N, dim)."""
    B, N, three_dim = qkv3.shape
    dim = n_heads * head_dim
    assert three_dim == 3 * dim
    kern = functools.partial(
        _attn_kernel, n_heads=n_heads, head_dim=head_dim, scale=scale
    )
    return pl.pallas_call(
        kern,
        out_shape=jax.ShapeDtypeStruct((B, N, dim), qkv3.dtype),
        grid=(B,),
        in_specs=[pl.BlockSpec((1, N, three_dim), lambda b: (b, 0, 0))],
        out_specs=pl.BlockSpec((1, N, dim), lambda b: (b, 0, 0)),
        compiler_params=pltpu.CompilerParams(dimension_semantics=("parallel",)),
    )(qkv3)


# ---------------------------------------------------------------------------
# Full module forward
# ---------------------------------------------------------------------------
def attention_forward(x, params, n_heads):
    """x: (B, N, dim) -> (B, N, dim). Matches PyTorch Attention.forward (eval)."""
    B, N, dim = x.shape
    head_dim = dim // n_heads
    scale = head_dim ** (-0.5)

    # qkv projection (tiled matmul kernel).
    qkv = pallas_linear(x.reshape(B * N, dim), params["w_qkv"], params["b_qkv"])
    qkv = qkv.reshape(B, N, 3 * dim)          # contiguous reshape: no HBM shuffle

    # Attention core reads q/k/v straight from the qkv slab and writes the
    # merged-heads context directly in (B, N, dim) layout.
    ctx = pallas_attention_core(qkv, n_heads, head_dim, scale)

    # Output projection (tiled matmul kernel).
    out = pallas_linear(ctx.reshape(B * N, dim), params["w_proj"], params["b_proj"])
    return out.reshape(B, N, dim)


# ---------------------------------------------------------------------------
# Pure-JAX reference (for correctness check)
# ---------------------------------------------------------------------------
def attention_ref(x, params, n_heads):
    B, N, dim = x.shape
    head_dim = dim // n_heads
    scale = head_dim ** (-0.5)
    qkv = x @ params["w_qkv"] + params["b_qkv"]
    qkv = qkv.reshape(B, N, 3, n_heads, head_dim)
    qkv = jnp.transpose(qkv, (2, 0, 3, 1, 4))
    q, k, v = qkv[0], qkv[1], qkv[2]
    dp = jnp.einsum("bhnd,bhmd->bhnm", q, k) * scale
    attn = jax.nn.softmax(dp, axis=-1)
    wa = jnp.einsum("bhnm,bhmd->bhnd", attn, v)
    wa = jnp.transpose(wa, (0, 2, 1, 3)).reshape(B, N, dim)
    return wa @ params["w_proj"] + params["b_proj"]


if __name__ == "__main__":
    # Small shapes consistent with the module: dim divisible by n_heads.
    B, N, dim, n_heads = 2, 8, 32, 4

    key = jax.random.PRNGKey(0)
    k_x, k_wqkv, k_bqkv, k_wp, k_bp = jax.random.split(key, 5)

    x = jax.random.normal(k_x, (B, N, dim), dtype=jnp.float32)
    params = {
        # stored as (in, out): equivalent to torch Linear weight.T
        "w_qkv": jax.random.normal(k_wqkv, (dim, 3 * dim), jnp.float32) * 0.05,
        "b_qkv": jax.random.normal(k_bqkv, (3 * dim,), jnp.float32) * 0.05,
        "w_proj": jax.random.normal(k_wp, (dim, dim), jnp.float32) * 0.05,
        "b_proj": jax.random.normal(k_bp, (dim,), jnp.float32) * 0.05,
    }

    fwd = jax.jit(attention_forward, static_argnums=(2,))
    out = jax.block_until_ready(fwd(x, params, n_heads))

    ref = attention_ref(x, params, n_heads)
    assert out.shape == (B, N, dim)
    # Tolerance accounts for the approximate EUP reciprocal in the softmax
    # normalisation (relative error ~1e-4).
    assert jnp.allclose(out, ref, atol=2e-3, rtol=2e-3), "mismatch vs reference"

    print("KERNEL_OK")
</pallas_src>

<mosaic_0001>
module attributes {stable_mosaic.version = 11 : i64} {
  func.func @_linear_kernel(%arg0: i32, %arg1: i32, %arg2: i32, %arg3: memref<16x32xf32, #tpu.memory_space<vmem>>, %arg4: memref<32x96xf32, #tpu.memory_space<vmem>>, %arg5: memref<1x96xf32, #tpu.memory_space<vmem>>, %arg6: memref<16x96xf32, #tpu.memory_space<vmem>>, %arg7: memref<16x96xf32, #tpu.memory_space<vmem>>) attributes {dimension_semantics = [#tpu.dimension_semantics<parallel>, #tpu.dimension_semantics<parallel>, #tpu.dimension_semantics<arbitrary>], iteration_bounds = array<i64: 1, 1, 1>, scalar_prefetch = 0 : i64, scratch_operands = 1 : i64, tpu.core_type = #tpu.core_type<tc>, window_params = [{transform_indices = @transform_0, window_bounds = array<i64: 16, 32>}, {transform_indices = @transform_1, window_bounds = array<i64: 32, 96>}, {transform_indices = @transform_2, window_bounds = array<i64: 1, 96>}, {transform_indices = @transform_3, window_bounds = array<i64: 16, 96>}]} {
    %c0_i32 = arith.constant 0 : i32
    %0 = arith.cmpi eq, %arg2, %c0_i32 : i32
    %1 = arith.extui %0 : i1 to i32
    %c0_i32_0 = arith.constant 0 : i32
    %2 = arith.cmpi ne, %1, %c0_i32_0 : i32
    scf.if %2 {
      %cst_10 = arith.constant 0.000000e+00 : f32
      %12 = vector.broadcast %cst_10 : f32 to vector<16x96xf32>
      %c0_11 = arith.constant 0 : index
      %c0_12 = arith.constant 0 : index
      %13 = vector.load %arg7[%c0_11, %c0_12] : memref<16x96xf32, #tpu.memory_space<vmem>>, vector<16x96xf32>
      tpu.vector_store %arg7[%c0_11, %c0_12], %12 {strides = array<i32>} : memref<16x96xf32, #tpu.memory_space<vmem>>, vector<16x96xf32>,
    } else {
    }
    %c0 = arith.constant 0 : index
    %c0_1 = arith.constant 0 : index
    %3 = vector.load %arg7[%c0, %c0_1] : memref<16x96xf32, #tpu.memory_space<vmem>>, vector<16x96xf32>
    %c0_2 = arith.constant 0 : index
    %c0_3 = arith.constant 0 : index
    %4 = vector.load %arg3[%c0_2, %c0_3] : memref<16x32xf32, #tpu.memory_space<vmem>>, vector<16x32xf32>
    %c0_4 = arith.constant 0 : index
    %c0_5 = arith.constant 0 : index
    %5 = vector.load %arg4[%c0_4, %c0_5] : memref<32x96xf32, #tpu.memory_space<vmem>>, vector<32x96xf32>
    %cst = arith.constant dense<0.000000e+00> : vector<16x96xf32>
    %6 = tpu.matmul %4, %5, %cst {dimension_numbers = #tpu.dot_dimension_numbers<[1], [0], [0], [1], [0, 0, 1, 1], [], []>} : vector<16x32xf32>, vector<32x96xf32>, vector<16x96xf32> -> vector<16x96xf32>
    %7 = arith.addf %3, %6 : vector<16x96xf32>
    %c0_6 = arith.constant 0 : index
    %c0_7 = arith.constant 0 : index
    %8 = vector.load %arg7[%c0_6, %c0_7] : memref<16x96xf32, #tpu.memory_space<vmem>>, vector<16x96xf32>
    tpu.vector_store %arg7[%c0_6, %c0_7], %7 {strides = array<i32>} : memref<16x96xf32, #tpu.memory_space<vmem>>, vector<16x96xf32>,
    %c0_i32_8 = arith.constant 0 : i32
    %9 = arith.cmpi eq, %arg2, %c0_i32_8 : i32
    %10 = arith.extui %9 : i1 to i32
    %c0_i32_9 = arith.constant 0 : i32
    %11 = arith.cmpi ne, %10, %c0_i32_9 : i32
    scf.if %11 {
      %c0_10 = arith.constant 0 : index
      %c0_11 = arith.constant 0 : index
      %12 = vector.load %arg7[%c0_10, %c0_11] : memref<16x96xf32, #tpu.memory_space<vmem>>, vector<16x96xf32>
      %c0_12 = arith.constant 0 : index
      %c0_13 = arith.constant 0 : index
      %13 = vector.load %arg5[%c0_12, %c0_13] : memref<1x96xf32, #tpu.memory_space<vmem>>, vector<1x96xf32>
      %14 = vector.broadcast %13 : vector<1x96xf32> to vector<16x96xf32>
      %15 = arith.addf %12, %14 : vector<16x96xf32>
      %c0_14 = arith.constant 0 : index
      %c0_15 = arith.constant 0 : index
      %16 = vector.load %arg6[%c0_14, %c0_15] : memref<16x96xf32, #tpu.memory_space<vmem>>, vector<16x96xf32>
      tpu.vector_store %arg6[%c0_14, %c0_15], %15 {strides = array<i32>} : memref<16x96xf32, #tpu.memory_space<vmem>>, vector<16x96xf32>,
    } else {
    }
    return
  }
  func.func @transform_0(%arg0: i32, %arg1: i32, %arg2: i32) -> (i32, i32) {
    %c0_i32 = arith.constant 0 : i32
    return %arg0, %arg2 : i32, i32
  }
  func.func @transform_1(%arg0: i32, %arg1: i32, %arg2: i32) -> (i32, i32) {
    %c0_i32 = arith.constant 0 : i32
    return %arg2, %arg1 : i32, i32
  }
  func.func @transform_2(%arg0: i32, %arg1: i32, %arg2: i32) -> (i32, i32) {
    %c0_i32 = arith.constant 0 : i32
    %c0_i32_0 = arith.constant 0 : i32
    return %c0_i32, %arg1 : i32, i32
  }
  func.func @transform_3(%arg0: i32, %arg1: i32, %arg2: i32) -> (i32, i32) {
    %c0_i32 = arith.constant 0 : i32
    return %arg0, %arg1 : i32, i32
  }
}

module attributes {stable_mosaic.version = 11 : i64} {
  func.func @_attn_kernel(%arg0: i32, %arg1: memref<1x8x96xf32, #tpu.memory_space<vmem>>, %arg2: memref<1x8x32xf32, #tpu.memory_space<vmem>>) attributes {dimension_semantics = [#tpu.dimension_semantics<parallel>], iteration_bounds = array<i64: 2>, scalar_prefetch = 0 : i64, scratch_operands = 0 : i64, tpu.core_type = #tpu.core_type<tc>, window_params = [{transform_indices = @transform_0, window_bounds = array<i64: 1, 8, 96>}, {transform_indices = @transform_1, window_bounds = array<i64: 1, 8, 32>}]} {
    %c0 = arith.constant 0 : index
    %c0_0 = arith.constant 0 : index
    %c0_1 = arith.constant 0 : index
    %0 = vector.load %arg1[%c0, %c0_0, %c0_1] : memref<1x8x96xf32, #tpu.memory_space<vmem>>, vector<1x8x8xf32>
    %1 = vector.shape_cast %0 : vector<1x8x8xf32> to vector<8x8xf32>
    %cst = arith.constant 0.353553385 : f32
    %2 = vector.broadcast %cst : f32 to vector<8x8xf32>
    %3 = arith.mulf %1, %2 : vector<8x8xf32>
    %c0_2 = arith.constant 0 : index
    %c0_3 = arith.constant 0 : index
    %c32 = arith.constant 32 : index
    %4 = vector.load %arg1[%c0_2, %c0_3, %c32] : memref<1x8x96xf32, #tpu.memory_space<vmem>>, vector<1x8x8xf32>
    %5 = vector.shape_cast %4 : vector<1x8x8xf32> to vector<8x8xf32>
    %c0_4 = arith.constant 0 : index
    %c0_5 = arith.constant 0 : index
    %c64 = arith.constant 64 : index
    %6 = vector.load %arg1[%c0_4, %c0_5, %c64] : memref<1x8x96xf32, #tpu.memory_space<vmem>>, vector<1x8x8xf32>
    %7 = vector.shape_cast %6 : vector<1x8x8xf32> to vector<8x8xf32>
    %cst_6 = arith.constant dense<0.000000e+00> : vector<8x8xf32>
    %8 = tpu.matmul %3, %5, %cst_6 {dimension_numbers = #tpu.dot_dimension_numbers<[1], [1], [0], [0], [0, 0, 1, 0], [], []>} : vector<8x8xf32>, vector<8x8xf32>, vector<8x8xf32> -> vector<8x8xf32>
    %cst_7 = arith.constant dense<0xFF800000> : vector<8xf32>
    %9 = vector.multi_reduction <maximumf>, %8, %cst_7 [1] : vector<8x8xf32> to vector<8xf32>
    %10 = vector.shape_cast %9 : vector<8xf32> to vector<8x1xf32>
    %11 = vector.broadcast %10 : vector<8x1xf32> to vector<8x8xf32>
    %12 = arith.subf %8, %11 : vector<8x8xf32>
    %13 = math.exp %12 : vector<8x8xf32>
    %cst_8 = arith.constant dense<0.000000e+00> : vector<8xf32>
    %14 = vector.multi_reduction <add>, %13, %cst_8 [1] : vector<8x8xf32> to vector<8xf32>
    %15 = vector.shape_cast %14 : vector<8xf32> to vector<8x1xf32>
    %cst_9 = arith.constant dense<0.000000e+00> : vector<8x8xf32>
    %16 = tpu.matmul %13, %7, %cst_9 {dimension_numbers = #tpu.dot_dimension_numbers<[1], [0], [0], [1], [0, 0, 1, 1], [], []>} : vector<8x8xf32>, vector<8x8xf32>, vector<8x8xf32> -> vector<8x8xf32>
    %17 = tpu.reciprocal %15 {approx = true} : vector<8x1xf32> -> vector<8x1xf32>
    %18 = vector.broadcast %17 : vector<8x1xf32> to vector<8x8xf32>
    %19 = arith.mulf %16, %18 : vector<8x8xf32>
    %c0_10 = arith.constant 0 : index
    %c0_11 = arith.constant 0 : index
    %c8 = arith.constant 8 : index
    %20 = vector.load %arg1[%c0_10, %c0_11, %c8] : memref<1x8x96xf32, #tpu.memory_space<vmem>>, vector<1x8x8xf32>
    %21 = vector.shape_cast %20 : vector<1x8x8xf32> to vector<8x8xf32>
    %cst_12 = arith.constant 0.353553385 : f32
    %22 = vector.broadcast %cst_12 : f32 to vector<8x8xf32>
    %23 = arith.mulf %21, %22 : vector<8x8xf32>
    %c0_13 = arith.constant 0 : index
    %c0_14 = arith.constant 0 : index
    %c40 = arith.constant 40 : index
    %24 = vector.load %arg1[%c0_13, %c0_14, %c40] : memref<1x8x96xf32, #tpu.memory_space<vmem>>, vector<1x8x8xf32>
    %25 = vector.shape_cast %24 : vector<1x8x8xf32> to vector<8x8xf32>
    %c0_15 = arith.constant 0 : index
    %c0_16 = arith.constant 0 : index
    %c72 = arith.constant 72 : index
    %26 = vector.load %arg1[%c0_15, %c0_16, %c72] : memref<1x8x96xf32, #tpu.memory_space<vmem>>, vector<1x8x8xf32>
    %27 = vector.shape_cast %26 : vector<1x8x8xf32> to vector<8x8xf32>
    %cst_17 = arith.constant dense<0.000000e+00> : vector<8x8xf32>
    %28 = tpu.matmul %23, %25, %cst_17 {dimension_numbers = #tpu.dot_dimension_numbers<[1], [1], [0], [0], [0, 0, 1, 0], [], []>} : vector<8x8xf32>, vector<8x8xf32>, vector<8x8xf32> -> vector<8x8xf32>
    %cst_18 = arith.constant dense<0xFF800000> : vector<8xf32>
    %29 = vector.multi_reduction <maximumf>, %28, %cst_18 [1] : vector<8x8xf32> to vector<8xf32>
    %30 = vector.shape_cast %29 : vector<8xf32> to vector<8x1xf32>
    %31 = vector.broadcast %30 : vector<8x1xf32> to vector<8x8xf32>
    %32 = arith.subf %28, %31 : vector<8x8xf32>
    %33 = math.exp %32 : vector<8x8xf32>
    %cst_19 = arith.constant dense<0.000000e+00> : vector<8xf32>
    %34 = vector.multi_reduction <add>, %33, %cst_19 [1] : vector<8x8xf32> to vector<8xf32>
    %35 = vector.shape_cast %34 : vector<8xf32> to vector<8x1xf32>
    %cst_20 = arith.constant dense<0.000000e+00> : vector<8x8xf32>
    %36 = tpu.matmul %33, %27, %cst_20 {dimension_numbers = #tpu.dot_dimension_numbers<[1], [0], [0], [1], [0, 0, 1, 1], [], []>} : vector<8x8xf32>, vector<8x8xf32>, vector<8x8xf32> -> vector<8x8xf32>
    %37 = tpu.reciprocal %35 {approx = true} : vector<8x1xf32> -> vector<8x1xf32>
    %38 = vector.broadcast %37 : vector<8x1xf32> to vector<8x8xf32>
    %39 = arith.mulf %36, %38 : vector<8x8xf32>
    %c0_21 = arith.constant 0 : index
    %c0_22 = arith.constant 0 : index
    %c16 = arith.constant 16 : index
    %40 = vector.load %arg1[%c0_21, %c0_22, %c16] : memref<1x8x96xf32, #tpu.memory_space<vmem>>, vector<1x8x8xf32>
    %41 = vector.shape_cast %40 : vector<1x8x8xf32> to vector<8x8xf32>
    %cst_23 = arith.constant 0.353553385 : f32
    %42 = vector.broadcast %cst_23 : f32 to vector<8x8xf32>
    %43 = arith.mulf %41, %42 : vector<8x8xf32>
    %c0_24 = arith.constant 0 : index
    %c0_25 = arith.constant 0 : index
    %c48 = arith.constant 48 : index
    %44 = vector.load %arg1[%c0_24, %c0_25, %c48] : memref<1x8x96xf32, #tpu.memory_space<vmem>>, vector<1x8x8xf32>
    %45 = vector.shape_cast %44 : vector<1x8x8xf32> to vector<8x8xf32>
    %c0_26 = arith.constant 0 : index
    %c0_27 = arith.constant 0 : index
    %c80 = arith.constant 80 : index
    %46 = vector.load %arg1[%c0_26, %c0_27, %c80] : memref<1x8x96xf32, #tpu.memory_space<vmem>>, vector<1x8x8xf32>
    %47 = vector.shape_cast %46 : vector<1x8x8xf32> to vector<8x8xf32>
    %cst_28 = arith.constant dense<0.000000e+00> : vector<8x8xf32>
    %48 = tpu.matmul %43, %45, %cst_28 {dimension_numbers = #tpu.dot_dimension_numbers<[1], [1], [0], [0], [0, 0, 1, 0], [], []>} : vector<8x8xf32>, vector<8x8xf32>, vector<8x8xf32> -> vector<8x8xf32>
    %cst_29 = arith.constant dense<0xFF800000> : vector<8xf32>
    %49 = vector.multi_reduction <maximumf>, %48, %cst_29 [1] : vector<8x8xf32> to vector<8xf32>
    %50 = vector.shape_cast %49 : vector<8xf32> to vector<8x1xf32>
    %51 = vector.broadcast %50 : vector<8x1xf32> to vector<8x8xf32>
    %52 = arith.subf %48, %51 : vector<8x8xf32>
    %53 = math.exp %52 : vector<8x8xf32>
    %cst_30 = arith.constant dense<0.000000e+00> : vector<8xf32>
    %54 = vector.multi_reduction <add>, %53, %cst_30 [1] : vector<8x8xf32> to vector<8xf32>
    %55 = vector.shape_cast %54 : vector<8xf32> to vector<8x1xf32>
    %cst_31 = arith.constant dense<0.000000e+00> : vector<8x8xf32>
    %56 = tpu.matmul %53, %47, %cst_31 {dimension_numbers = #tpu.dot_dimension_numbers<[1], [0], [0], [1], [0, 0, 1, 1], [], []>} : vector<8x8xf32>, vector<8x8xf32>, vector<8x8xf32> -> vector<8x8xf32>
    %57 = tpu.reciprocal %55 {approx = true} : vector<8x1xf32> -> vector<8x1xf32>
    %58 = vector.broadcast %57 : vector<8x1xf32> to vector<8x8xf32>
    %59 = arith.mulf %56, %58 : vector<8x8xf32>
    %c0_32 = arith.constant 0 : index
    %c0_33 = arith.constant 0 : index
    %c24 = arith.constant 24 : index
    %60 = vector.load %arg1[%c0_32, %c0_33, %c24] : memref<1x8x96xf32, #tpu.memory_space<vmem>>, vector<1x8x8xf32>
    %61 = vector.shape_cast %60 : vector<1x8x8xf32> to vector<8x8xf32>
    %cst_34 = arith.constant 0.353553385 : f32
    %62 = vector.broadcast %cst_34 : f32 to vector<8x8xf32>
    %63 = arith.mulf %61, %62 : vector<8x8xf32>
    %c0_35 = arith.constant 0 : index
    %c0_36 = arith.constant 0 : index
    %c56 = arith.constant 56 : index
    %64 = vector.load %arg1[%c0_35, %c0_36, %c56] : memref<1x8x96xf32, #tpu.memory_space<vmem>>, vector<1x8x8xf32>
    %65 = vector.shape_cast %64 : vector<1x8x8xf32> to vector<8x8xf32>
    %c0_37 = arith.constant 0 : index
    %c0_38 = arith.constant 0 : index
    %c88 = arith.constant 88 : index
    %66 = vector.load %arg1[%c0_37, %c0_38, %c88] : memref<1x8x96xf32, #tpu.memory_space<vmem>>, vector<1x8x8xf32>
    %67 = vector.shape_cast %66 : vector<1x8x8xf32> to vector<8x8xf32>
    %cst_39 = arith.constant dense<0.000000e+00> : vector<8x8xf32>
    %68 = tpu.matmul %63, %65, %cst_39 {dimension_numbers = #tpu.dot_dimension_numbers<[1], [1], [0], [0], [0, 0, 1, 0], [], []>} : vector<8x8xf32>, vector<8x8xf32>, vector<8x8xf32> -> vector<8x8xf32>
    %cst_40 = arith.constant dense<0xFF800000> : vector<8xf32>
    %69 = vector.multi_reduction <maximumf>, %68, %cst_40 [1] : vector<8x8xf32> to vector<8xf32>
    %70 = vector.shape_cast %69 : vector<8xf32> to vector<8x1xf32>
    %71 = vector.broadcast %70 : vector<8x1xf32> to vector<8x8xf32>
    %72 = arith.subf %68, %71 : vector<8x8xf32>
    %73 = math.exp %72 : vector<8x8xf32>
    %cst_41 = arith.constant dense<0.000000e+00> : vector<8xf32>
    %74 = vector.multi_reduction <add>, %73, %cst_41 [1] : vector<8x8xf32> to vector<8xf32>
    %75 = vector.shape_cast %74 : vector<8xf32> to vector<8x1xf32>
    %cst_42 = arith.constant dense<0.000000e+00> : vector<8x8xf32>
    %76 = tpu.matmul %73, %67, %cst_42 {dimension_numbers = #tpu.dot_dimension_numbers<[1], [0], [0], [1], [0, 0, 1, 1], [], []>} : vector<8x8xf32>, vector<8x8xf32>, vector<8x8xf32> -> vector<8x8xf32>
    %77 = tpu.reciprocal %75 {approx = true} : vector<8x1xf32> -> vector<8x1xf32>
    %78 = vector.broadcast %77 : vector<8x1xf32> to vector<8x8xf32>
    %79 = arith.mulf %76, %78 : vector<8x8xf32>
    %80 = tpu.concatenate %19, %39, %59, %79 in 1 : vector<8x8xf32>, vector<8x8xf32>, vector<8x8xf32>, vector<8x8xf32> -> vector<8x32xf32>
    %c0_43 = arith.constant 0 : index
    %c0_44 = arith.constant 0 : index
    %c0_45 = arith.constant 0 : index
    %81 = vector.load %arg2[%c0_43, %c0_44, %c0_45] : memref<1x8x32xf32, #tpu.memory_space<vmem>>, vector<1x8x32xf32>
    %82 = vector.shape_cast %81 : vector<1x8x32xf32> to vector<8x32xf32>
    %83 = vector.shape_cast %80 : vector<8x32xf32> to vector<1x8x32xf32>
    tpu.vector_store %arg2[%c0_43, %c0_44, %c0_45], %83 {strides = array<i32>} : memref<1x8x32xf32, #tpu.memory_space<vmem>>, vector<1x8x32xf32>,
    return
  }
  func.func @transform_0(%arg0: i32) -> (i32, i32, i32) {
    %c0_i32 = arith.constant 0 : i32
    %c0_i32_0 = arith.constant 0 : i32
    %c0_i32_1 = arith.constant 0 : i32
    return %arg0, %c0_i32, %c0_i32_0 : i32, i32, i32
  }
  func.func @transform_1(%arg0: i32) -> (i32, i32, i32) {
    %c0_i32 = arith.constant 0 : i32
    %c0_i32_0 = arith.constant 0 : i32
    %c0_i32_1 = arith.constant 0 : i32
    return %arg0, %c0_i32, %c0_i32_0 : i32, i32, i32
  }
}

module attributes {stable_mosaic.version = 11 : i64} {
  func.func @_linear_kernel(%arg0: i32, %arg1: i32, %arg2: i32, %arg3: memref<16x32xf32, #tpu.memory_space<vmem>>, %arg4: memref<32x32xf32, #tpu.memory_space<vmem>>, %arg5: memref<1x32xf32, #tpu.memory_space<vmem>>, %arg6: memref<16x32xf32, #tpu.memory_space<vmem>>, %arg7: memref<16x32xf32, #tpu.memory_space<vmem>>) attributes {dimension_semantics = [#tpu.dimension_semantics<parallel>, #tpu.dimension_semantics<parallel>, #tpu.dimension_semantics<arbitrary>], iteration_bounds = array<i64: 1, 1, 1>, scalar_prefetch = 0 : i64, scratch_operands = 1 : i64, tpu.core_type = #tpu.core_type<tc>, window_params = [{transform_indices = @transform_0, window_bounds = array<i64: 16, 32>}, {transform_indices = @transform_1, window_bounds = array<i64: 32, 32>}, {transform_indices = @transform_2, window_bounds = array<i64: 1, 32>}, {transform_indices = @transform_3, window_bounds = array<i64: 16, 32>}]} {
    %c0_i32 = arith.constant 0 : i32
    %0 = arith.cmpi eq, %arg2, %c0_i32 : i32
    %1 = arith.extui %0 : i1 to i32
    %c0_i32_0 = arith.constant 0 : i32
    %2 = arith.cmpi ne, %1, %c0_i32_0 : i32
    scf.if %2 {
      %cst_10 = arith.constant 0.000000e+00 : f32
      %12 = vector.broadcast %cst_10 : f32 to vector<16x32xf32>
      %c0_11 = arith.constant 0 : index
      %c0_12 = arith.constant 0 : index
      %13 = vector.load %arg7[%c0_11, %c0_12] : memref<16x32xf32, #tpu.memory_space<vmem>>, vector<16x32xf32>
      tpu.vector_store %arg7[%c0_11, %c0_12], %12 {strides = array<i32>} : memref<16x32xf32, #tpu.memory_space<vmem>>, vector<16x32xf32>,
    } else {
    }
    %c0 = arith.constant 0 : index
    %c0_1 = arith.constant 0 : index
    %3 = vector.load %arg7[%c0, %c0_1] : memref<16x32xf32, #tpu.memory_space<vmem>>, vector<16x32xf32>
    %c0_2 = arith.constant 0 : index
    %c0_3 = arith.constant 0 : index
    %4 = vector.load %arg3[%c0_2, %c0_3] : memref<16x32xf32, #tpu.memory_space<vmem>>, vector<16x32xf32>
    %c0_4 = arith.constant 0 : index
    %c0_5 = arith.constant 0 : index
    %5 = vector.load %arg4[%c0_4, %c0_5] : memref<32x32xf32, #tpu.memory_space<vmem>>, vector<32x32xf32>
    %cst = arith.constant dense<0.000000e+00> : vector<16x32xf32>
    %6 = tpu.matmul %4, %5, %cst {dimension_numbers = #tpu.dot_dimension_numbers<[1], [0], [0], [1], [0, 0, 1, 1], [], []>} : vector<16x32xf32>, vector<32x32xf32>, vector<16x32xf32> -> vector<16x32xf32>
    %7 = arith.addf %3, %6 : vector<16x32xf32>
    %c0_6 = arith.constant 0 : index
    %c0_7 = arith.constant 0 : index
    %8 = vector.load %arg7[%c0_6, %c0_7] : memref<16x32xf32, #tpu.memory_space<vmem>>, vector<16x32xf32>
    tpu.vector_store %arg7[%c0_6, %c0_7], %7 {strides = array<i32>} : memref<16x32xf32, #tpu.memory_space<vmem>>, vector<16x32xf32>,
    %c0_i32_8 = arith.constant 0 : i32
    %9 = arith.cmpi eq, %arg2, %c0_i32_8 : i32
    %10 = arith.extui %9 : i1 to i32
    %c0_i32_9 = arith.constant 0 : i32
    %11 = arith.cmpi ne, %10, %c0_i32_9 : i32
    scf.if %11 {
      %c0_10 = arith.constant 0 : index
      %c0_11 = arith.constant 0 : index
      %12 = vector.load %arg7[%c0_10, %c0_11] : memref<16x32xf32, #tpu.memory_space<vmem>>, vector<16x32xf32>
      %c0_12 = arith.constant 0 : index
      %c0_13 = arith.constant 0 : index
      %13 = vector.load %arg5[%c0_12, %c0_13] : memref<1x32xf32, #tpu.memory_space<vmem>>, vector<1x32xf32>
      %14 = vector.broadcast %13 : vector<1x32xf32> to vector<16x32xf32>
      %15 = arith.addf %12, %14 : vector<16x32xf32>
      %c0_14 = arith.constant 0 : index
      %c0_15 = arith.constant 0 : index
      %16 = vector.load %arg6[%c0_14, %c0_15] : memref<16x32xf32, #tpu.memory_space<vmem>>, vector<16x32xf32>
      tpu.vector_store %arg6[%c0_14, %c0_15], %15 {strides = array<i32>} : memref<16x32xf32, #tpu.memory_space<vmem>>, vector<16x32xf32>,
    } else {
    }
    return
  }
  func.func @transform_0(%arg0: i32, %arg1: i32, %arg2: i32) -> (i32, i32) {
    %c0_i32 = arith.constant 0 : i32
    return %arg0, %arg2 : i32, i32
  }
  func.func @transform_1(%arg0: i32, %arg1: i32, %arg2: i32) -> (i32, i32) {
    %c0_i32 = arith.constant 0 : i32
    return %arg2, %arg1 : i32, i32
  }
  func.func @transform_2(%arg0: i32, %arg1: i32, %arg2: i32) -> (i32, i32) {
    %c0_i32 = arith.constant 0 : i32
    %c0_i32_0 = arith.constant 0 : i32
    return %c0_i32, %arg1 : i32, i32
  }
  func.func @transform_3(%arg0: i32, %arg1: i32, %arg2: i32) -> (i32, i32) {
    %c0_i32 = arith.constant 0 : i32
    return %arg0, %arg1 : i32, i32
  }
}

</mosaic_0001>

<llo_original>
// kernel: attention_forward.5
$region0: #{attention_forward.5}
  #allocation0 [shape = 'u32[]', space=smem, size = 0x4, offset = 0x4, fixed_abs, tag = 'smem constant byte address 0x4 - core index']
  #allocation1 [shape = 'u32[144,128]{1,0:T(1,128)}', space=vmem, size = 0x12000, scoped, tag = 'internal scratch']
  #allocation2 [shape = 'f32[16,32]{1,0:T(8,128)}', space=vmem, size = 0x2000, scoped, tag = 'scratch operand']
  %s0 = inlined_call_operand.vmem [shape: f32[16,32], index: 0, kind: input, shape index: {}]
  %s1 = inlined_call_operand.vmem [shape: f32[32,32], index: 1, kind: input, shape index: {}]
  %s2 = inlined_call_operand.vmem [shape: f32[1,32], index: 2, kind: input, shape index: {}]
  %s3 = inlined_call_operand.hbm [shape: f32[16,32], index: 3, kind: output, shape index: {}]
  %s4 = sld [smem:[#allocation0]]
  $region30: #{attention_forward.5} parent=0
    _
  %s6 = ssub.s32 1, %s4
  %s7 = scalar_select 0, %s6, %s4
  $region1: #{attention_forward.5} parent=0
    #allocation3 [shape = 'u8[8192]{0}', space=vmem, size = 0x2000, scoped, tag = 'output window, operand 0, single buffered']
    #allocation4 [shape = 's32[1]{0}', space=sflag, size = 0x4, scoped, tag = 'scoped memory for attention_forward.5']
    %8 = vsyncpa [#allocation4], 0
    // Predicated region
    $region2: #{attention_forward.5} parent=1 // pred_check
      _
    $region3: #{attention_forward.5} parent=1 // pred_check_branch
      %10 = sbr.rel (0) target = $region5
    $region4: #{attention_forward.5} parent=1 // pred_region
      _
    $region5: #{attention_forward.5} parent=1 // pred_fallthru
      _
    // Predicated region
    $region6: #{attention_forward.5} parent=1 // pred_check
      _
    $region7: #{attention_forward.5} parent=1 // pred_check_branch
      %12 = sbr.rel (0) target = $region9
    $region8: #{attention_forward.5} parent=1 // pred_region
      _
    $region9: #{attention_forward.5} parent=1 // pred_fallthru
      _
    // Predicated region
    $region10: #{attention_forward.5} parent=1 // pred_check
      _
    $region11: #{attention_forward.5} parent=1 // pred_check_branch
      %14 = sbr.rel (0) target = $region13
    $region12: #{attention_forward.5} parent=1 // pred_region
      _
    $region13: #{attention_forward.5} parent=1 // pred_fallthru
      _
    %p15 = scmp.eq.s32.totalorder 0, 0
    // Predicated region
    $region14: #{attention_forward.5} parent=1 // pred_check
      %p16 = pneg %p15
    $region15: #{attention_forward.5} parent=1 // pred_check_branch
      %18 = sbr.rel (%p16) target = $region17
    $region16: #{attention_forward.5} parent=1 // pred_region
      %vm19 = vcmask 261120
      %20 = vst.msk [vmem:[#allocation2] sm:$0xff] %vm19, 0.0
      %21 = vst.msk [vmem:[#allocation2 + $0x8] sm:$0xff] %vm19, 0.0
    $region17: #{attention_forward.5} parent=1 // pred_fallthru
      _
    %v22 = vld [vmem:[#allocation2] sm:$0xff]
    %v23 = vld [vmem:[#allocation2 + $0x8] sm:$0xff]
    %v24 = vld [vmem:[%s0] sm:$0xff]
    %v25 = vld [vmem:[%s0 + $0x8] sm:$0xff]
    %v26 = vld [vmem:[%s1] sm:$0xff]
    %v27 = vld [vmem:[%s1 + $0x8] sm:$0xff]
    %v28 = vld [vmem:[%s1 + $0x10] sm:$0xff]
    %v29 = vld [vmem:[%s1 + $0x18] sm:$0xff]
    %vm30 = vcmask 261120
    %v32 = vsel %vm30, %v24, 0
    %v35 = vsel %vm30, %v25, 0
    %37 = vmatprep.subr.mxu0 0.0
    %38 = vmatpush1.msra.mxu0 %v26
    %39 = vmatprep.subr.mxu0 0.0
    %40 = vmatpush1.msra.mxu0 %v27
    %41 = vmatprep.subr.mxu0 0.0
    %42 = vmatpush1.msra.mxu0 %v28
    %43 = vmatprep.subr.mxu0 0.0
    %44 = vmatpush1.msra.mxu0 %v29
    %45 = vmatprep.subr.mxu0 0.0
    %46 = vmatpush1.msra.mxu0 0.0
    %47 = vmatprep.subr.mxu0 0.0
    %48 = vmatpush1.msra.mxu0 0.0
    %49 = vmatprep.subr.mxu0 0.0
    %50 = vmatpush1.msra.mxu0 0.0
    %51 = vmatprep.subr.mxu0 0.0
    %52 = vmatpush1.msra.mxu0 0.0
    %53 = vmatprep.subr.mxu0 0.0
    %54 = vmatpush1.msra.mxu0 0.0
    %55 = vmatprep.subr.mxu0 0.0
    %56 = vmatpush1.msra.mxu0 0.0
    %57 = vmatprep.subr.mxu0 0.0
    %58 = vmatpush1.msra.mxu0 0.0
    %59 = vmatprep.subr.mxu0 0.0
    %60 = vmatpush1.msra.mxu0 0.0
    %61 = vmatprep.subr.mxu0 0.0
    %62 = vmatpush1.msra.mxu0 0.0
    %63 = vmatprep.subr.mxu0 0.0
    %64 = vmatpush1.msra.mxu0 0.0
    %65 = vmatprep.subr.mxu0 0.0
    %66 = vmatpush1.msra.mxu0 0.0
    %67 = vmatprep.subr.mxu0 0.0
    %68 = vmatpush1.msra.mxu0 0.0
    %69 = vmatprep.subr.mxu0 0.0
    %70 = vmatpush1.msra.mxu0 0.0
    %71 = vmatprep.subr.mxu0 0.0
    %72 = vmatpush1.msra.mxu0 0.0
    %73 = vmatprep.subr.mxu0 0.0
    %74 = vmatpush1.msra.mxu0 0.0
    %75 = vmatprep.subr.mxu0 0.0
    %76 = vmatpush1.msra.mxu0 0.0
    %77 = vmatprep.subr.mxu0 0.0
    %78 = vmatpush1.msra.mxu0 0.0
    %79 = vmatprep.subr.mxu0 0.0
    %80 = vmatpush1.msra.mxu0 0.0
    %81 = vmatprep.subr.mxu0 0.0
    %82 = vmatpush1.msra.mxu0 0.0
    %83 = vmatprep.subr.mxu0 0.0
    %84 = vmatpush1.msra.mxu0 0.0
    %85 = vmatprep.subr.mxu0 0.0
    %86 = vmatpush1.msra.mxu0 0.0
    %87 = vmatprep.subr.mxu0 0.0
    %88 = vmatpush1.msra.mxu0 0.0
    %89 = vmatprep.subr.mxu0 0.0
    %90 = vmatpush1.msra.mxu0 0.0
    %91 = vmatprep.subr.mxu0 0.0
    %92 = vmatpush1.msra.mxu0 0.0
    %93 = vmatprep.subr.mxu0 0.0
    %94 = vmatpush1.msra.mxu0 0.0
    %95 = vmatprep.subr.mxu0 0.0
    %96 = vmatpush1.msra.mxu0 0.0
    %97 = vmatprep.subr.mxu0 0.0
    %98 = vmatpush1.msra.mxu0 0.0
    %99 = vmatprep.subr.mxu0 0.0
    %100 = vmatpush1.msra.mxu0 0.0
    %101 = vmatprep.mubr.f32.mxu0 0.0
    %102 = vmatmul.mubr.f32.gmra.mrb[0].mxu0 %v32
    %v103 = vpop.f32.mrb[0].mxu0
    %v104 = vadd.f32 0.0, %v103
    %v105 = vpop.f32.mrb[0].mxu0
    %106 = vmatprep.mubr.f32.mxu0 0.0
    %107 = vmatmul.mubr.f32.gmra.mrb[0].mxu0 %v35
    %v108 = vpop.f32.mrb[0].mxu0
    %v109 = vadd.f32 0.0, %v108
    %v110 = vpop.f32.mrb[0].mxu0
    %111 = vdwg.mxu0
    %v112 = vadd.f32 %v22, %v104
    %v113 = vadd.f32 %v23, %v109
    %114 = vst.msk [vmem:[#allocation2] sm:$0xff] %vm30, %v112
    %115 = vst.msk [vmem:[#allocation2 + $0x8] sm:$0xff] %vm30, %v113
    // Predicated region
    $region18: #{attention_forward.5} parent=1 // pred_check
      %p116 = pneg %p15
    $region19: #{attention_forward.5} parent=1 // pred_check_branch
      %118 = sbr.rel (%p116) target = $region21
    $region20: #{attention_forward.5} parent=1 // pred_region
      %v119 = vld [vmem:[#allocation2] sm:$0xff]
      %v120 = vld [vmem:[#allocation2 + $0x8] sm:$0xff]
      %v121 = vld [vmem:[%s2] sm:$0x1]
      %v123 = vlaneseq
      %v124 = vshrl.u32 %v123, 7
      %v125 = vsub.s32 0, %v124
      %v126 = vrot.slane %v121, %v125
      %v128 = vadd.f32 %v119, %v126
      %v129 = vadd.f32 %v120, %v126
      %130 = vst.msk [vmem:[#allocation3] sm:$0xff] %vm30, %v128
      %131 = vst.msk [vmem:[#allocation3 + $0x8] sm:$0xff] %vm30, %v129
    $region21: #{attention_forward.5} parent=1 // pred_fallthru
      _
    // Predicated region
    $region22: #{attention_forward.5} parent=1 // pred_check
      _
    $region23: #{attention_forward.5} parent=1 // pred_check_branch
      %133 = sbr.rel (0) target = $region25
    $region24: #{attention_forward.5} parent=1 // pred_region
      %s135 = ssub.s32 256, 256
      %136 = vsyncadd [#allocation4], %s135
      %s137 = sshll.u32 [#allocation3], 4
      %s138 = int_to_ptr.vmem [resolvable:$true] %s137
      %143 = dma.vmem_to_hbm [thread:$0]  %s138, 256, %s3, [#allocation4], 128, 128, 8
    $region25: #{attention_forward.5} parent=1 // pred_fallthru
      _
    // Predicated region
    $region26: #{attention_forward.5} parent=1 // pred_check
      _
    $region27: #{attention_forward.5} parent=1 // pred_check_branch
      %145 = sbr.rel (0) target = $region29
    $region28: #{attention_forward.5} parent=1 // pred_region
      %146 = dma.done [#allocation4], 256
    $region29: #{attention_forward.5} parent=1 // pred_fallthru
      _
    %147 = vsyncpa [#allocation4], 1

// kernel: attention_forward.3
$region0: #{attention_forward.3}
  #allocation0 [shape = 'u32[]', space=smem, size = 0x4, offset = 0x4, fixed_abs, tag = 'smem constant byte address 0x4 - core index']
  #allocation1 [shape = 'u32[144,128]{1,0:T(1,128)}', space=vmem, size = 0x12000, scoped, tag = 'internal scratch']
  #allocation2 [shape = 'f32[16,96]{1,0:T(8,128)}', space=vmem, size = 0x2000, scoped, tag = 'scratch operand']
  %s0 = inlined_call_operand.hbm [shape: f32[16,32], index: 0, kind: input, shape index: {}]
  %s1 = inlined_call_operand.hbm [shape: f32[32,96], index: 1, kind: input, shape index: {}]
  %s2 = inlined_call_operand.vmem [shape: f32[1,96], index: 2, kind: input, shape index: {}]
  %s3 = inlined_call_operand.vmem [shape: f32[16,96], index: 3, kind: output, shape index: {}]
  %s4 = sld [smem:[#allocation0]]
  $region38: #{attention_forward.3} parent=0
    _
  %s6 = ssub.s32 1, %s4
  %s7 = scalar_select 0, %s6, %s4
  $region1: #{attention_forward.3} parent=0
    #allocation3 [shape = 'u8[8192]{0}', space=vmem, size = 0x2000, scoped, tag = 'input window, operand 0, single buffered']
    #allocation4 [shape = 's32[1]{0}', space=sflag, size = 0x4, scoped, tag = 'scoped memory for attention_forward.3']
    #allocation5 [shape = 'u8[16384]{0}', space=vmem, size = 0x4000, scoped, tag = 'input window, operand 1, single buffered']
    #allocation6 [shape = 's32[1]{0}', space=sflag, size = 0x4, scoped, tag = 'scoped memory for attention_forward.3']
    %8 = vsyncpa [#allocation4], 0
    %9 = vsyncpa [#allocation6], 0
    // Predicated region
    $region2: #{attention_forward.3} parent=1 // pred_check
      _
    $region3: #{attention_forward.3} parent=1 // pred_check_branch
      %11 = sbr.rel (0) target = $region5
    $region4: #{attention_forward.3} parent=1 // pred_region
      %s13 = ssub.s32 256, 256
      %14 = vsyncadd [#allocation4], %s13
      %s15 = sshll.u32 [#allocation3], 4
      %s16 = int_to_ptr.vmem [resolvable:$true] %s15
      %21 = dma.hbm_to_vmem [thread:$0]  %s0, 256, %s16, [#allocation4], 128, 128, 8
    $region5: #{attention_forward.3} parent=1 // pred_fallthru
      _
    // Predicated region
    $region6: #{attention_forward.3} parent=1 // pred_check
      _
    $region7: #{attention_forward.3} parent=1 // pred_check_branch
      %23 = sbr.rel (0) target = $region9
    $region8: #{attention_forward.3} parent=1 // pred_region
      %s25 = ssub.s32 512, 512
      %26 = vsyncadd [#allocation6], %s25
      %s27 = sshll.u32 [#allocation5], 4
      %s28 = int_to_ptr.vmem [resolvable:$true] %s27
      %33 = dma.hbm_to_vmem [thread:$0]  %s1, 512, %s28, [#allocation6], 128, 128, 8
    $region9: #{attention_forward.3} parent=1 // pred_fallthru
      _
    // Predicated region
    $region10: #{attention_forward.3} parent=1 // pred_check
      _
    $region11: #{attention_forward.3} parent=1 // pred_check_branch
      %35 = sbr.rel (0) target = $region13
    $region12: #{attention_forward.3} parent=1 // pred_region
      _
    $region13: #{attention_forward.3} parent=1 // pred_fallthru
      _
    // Predicated region
    $region14: #{attention_forward.3} parent=1 // pred_check
      _
    $region15: #{attention_forward.3} parent=1 // pred_check_branch
      %37 = sbr.rel (0) target = $region17
    $region16: #{attention_forward.3} parent=1 // pred_region
      %38 = dma.done [#allocation4], 256
    $region17: #{attention_forward.3} parent=1 // pred_fallthru
      _
    // Predicated region
    $region18: #{attention_forward.3} parent=1 // pred_check
      _
    $region19: #{attention_forward.3} parent=1 // pred_check_branch
      %40 = sbr.rel (0) target = $region21
    $region20: #{attention_forward.3} parent=1 // pred_region
      %41 = dma.done [#allocation6], 512
    $region21: #{attention_forward.3} parent=1 // pred_fallthru
      _
    %p42 = scmp.eq.s32.totalorder 0, 0
    // Predicated region
    $region22: #{attention_forward.3} parent=1 // pred_check
      %p43 = pneg %p42
    $region23: #{attention_forward.3} parent=1 // pred_check_branch
      %45 = sbr.rel (%p43) target = $region25
    $region24: #{attention_forward.3} parent=1 // pred_region
      %vm46 = vcmask 785408
      %47 = vst.msk [vmem:[#allocation2] sm:$0xff] %vm46, 0.0
      %48 = vst.msk [vmem:[#allocation2 + $0x8] sm:$0xff] %vm46, 0.0
    $region25: #{attention_forward.3} parent=1 // pred_fallthru
      _
    %v49 = vld [vmem:[#allocation2] sm:$0xff]
    %v50 = vld [vmem:[#allocation2 + $0x8] sm:$0xff]
    %v51 = vld [vmem:[#allocation3] sm:$0xff]
    %v52 = vld [vmem:[#allocation3 + $0x8] sm:$0xff]
    %v53 = vld [vmem:[#allocation5] sm:$0xff]
    %v54 = vld [vmem:[#allocation5 + $0x8] sm:$0xff]
    %v55 = vld [vmem:[#allocation5 + $0x10] sm:$0xff]
    %v56 = vld [vmem:[#allocation5 + $0x18] sm:$0xff]
    %vm57 = vcmask 261120
    %v59 = vsel %vm57, %v51, 0
    %v62 = vsel %vm57, %v52, 0
    %64 = vmatprep.subr.mxu0 0.0
    %65 = vmatpush1.msra.mxu0 %v53
    %66 = vmatprep.subr.mxu0 0.0
    %67 = vmatpush1.msra.mxu0 %v54
    %68 = vmatprep.subr.mxu0 0.0
    %69 = vmatpush1.msra.mxu0 %v55
    %70 = vmatprep.subr.mxu0 0.0
    %71 = vmatpush1.msra.mxu0 %v56
    %72 = vmatprep.subr.mxu0 0.0
    %73 = vmatpush1.msra.mxu0 0.0
    %74 = vmatprep.subr.mxu0 0.0
    %75 = vmatpush1.msra.mxu0 0.0
    %76 = vmatprep.subr.mxu0 0.0
    %77 = vmatpush1.msra.mxu0 0.0
    %78 = vmatprep.subr.mxu0 0.0
    %79 = vmatpush1.msra.mxu0 0.0
    %80 = vmatprep.subr.mxu0 0.0
    %81 = vmatpush1.msra.mxu0 0.0
    %82 = vmatprep.subr.mxu0 0.0
    %83 = vmatpush1.msra.mxu0 0.0
    %84 = vmatprep.subr.mxu0 0.0
    %85 = vmatpush1.msra.mxu0 0.0
    %86 = vmatprep.subr.mxu0 0.0
    %87 = vmatpush1.msra.mxu0 0.0
    %88 = vmatprep.subr.mxu0 0.0
    %89 = vmatpush1.msra.mxu0 0.0
    %90 = vmatprep.subr.mxu0 0.0
    %91 = vmatpush1.msra.mxu0 0.0
    %92 = vmatprep.subr.mxu0 0.0
    %93 = vmatpush1.msra.mxu0 0.0
    %94 = vmatprep.subr.mxu0 0.0
    %95 = vmatpush1.msra.mxu0 0.0
    %96 = vmatprep.subr.mxu0 0.0
    %97 = vmatpush1.msra.mxu0 0.0
    %98 = vmatprep.subr.mxu0 0.0
    %99 = vmatpush1.msra.mxu0 0.0
    %100 = vmatprep.subr.mxu0 0.0
    %101 = vmatpush1.msra.mxu0 0.0
    %102 = vmatprep.subr.mxu0 0.0
    %103 = vmatpush1.msra.mxu0 0.0
    %104 = vmatprep.subr.mxu0 0.0
    %105 = vmatpush1.msra.mxu0 0.0
    %106 = vmatprep.subr.mxu0 0.0
    %107 = vmatpush1.msra.mxu0 0.0
    %108 = vmatprep.subr.mxu0 0.0
    %109 = vmatpush1.msra.mxu0 0.0
    %110 = vmatprep.subr.mxu0 0.0
    %111 = vmatpush1.msra.mxu0 0.0
    %112 = vmatprep.subr.mxu0 0.0
    %113 = vmatpush1.msra.mxu0 0.0
    %114 = vmatprep.subr.mxu0 0.0
    %115 = vmatpush1.msra.mxu0 0.0
    %116 = vmatprep.subr.mxu0 0.0
    %117 = vmatpush1.msra.mxu0 0.0
    %118 = vmatprep.subr.mxu0 0.0
    %119 = vmatpush1.msra.mxu0 0.0
    %120 = vmatprep.subr.mxu0 0.0
    %121 = vmatpush1.msra.mxu0 0.0
    %122 = vmatprep.subr.mxu0 0.0
    %123 = vmatpush1.msra.mxu0 0.0
    %124 = vmatprep.subr.mxu0 0.0
    %125 = vmatpush1.msra.mxu0 0.0
    %126 = vmatprep.subr.mxu0 0.0
    %127 = vmatpush1.msra.mxu0 0.0
    %128 = vmatprep.mubr.f32.mxu0 0.0
    %129 = vmatmul.mubr.f32.gmra.mrb[0].mxu0 %v59
    %v130 = vpop.f32.mrb[0].mxu0
    %v131 = vadd.f32 0.0, %v130
    %v132 = vpop.f32.mrb[0].mxu0
    %133 = vmatprep.mubr.f32.mxu0 0.0
    %134 = vmatmul.mubr.f32.gmra.mrb[0].mxu0 %v62
    %v135 = vpop.f32.mrb[0].mxu0
    %v136 = vadd.f32 0.0, %v135
    %v137 = vpop.f32.mrb[0].mxu0
    %138 = vdwg.mxu0
    %v139 = vadd.f32 %v49, %v131
    %v140 = vadd.f32 %v50, %v136
    %vm141 = vcmask 785408
    %142 = vst.msk [vmem:[#allocation2] sm:$0xff] %vm141, %v139
    %143 = vst.msk [vmem:[#allocation2 + $0x8] sm:$0xff] %vm141, %v140
    // Predicated region
    $region26: #{attention_forward.3} parent=1 // pred_check
      %p144 = pneg %p42
    $region27: #{attention_forward.3} parent=1 // pred_check_branch
      %146 = sbr.rel (%p144) target = $region29
    $region28: #{attention_forward.3} parent=1 // pred_region
      %v147 = vld [vmem:[#allocation2] sm:$0xff]
      %v148 = vld [vmem:[#allocation2 + $0x8] sm:$0xff]
      %v149 = vld [vmem:[%s2] sm:$0x1]
      %v151 = vlaneseq
      %v152 = vshrl.u32 %v151, 7
      %v153 = vsub.s32 0, %v152
      %v154 = vrot.slane %v149, %v153
      %v156 = vadd.f32 %v147, %v154
      %v157 = vadd.f32 %v148, %v154
      %158 = vst.msk [vmem:[%s3] sm:$0xff] %vm141, %v156
      %159 = vst.msk [vmem:[%s3 + $0x8] sm:$0xff] %vm141, %v157
    $region29: #{attention_forward.3} parent=1 // pred_fallthru
      _
    // Predicated region
    $region30: #{attention_forward.3} parent=1 // pred_check
      _
    $region31: #{attention_forward.3} parent=1 // pred_check_branch
      %161 = sbr.rel (0) target = $region33
    $region32: #{attention_forward.3} parent=1 // pred_region
      _
    $region33: #{attention_forward.3} parent=1 // pred_fallthru
      _
    // Predicated region
    $region34: #{attention_forward.3} parent=1 // pred_check
      _
    $region35: #{attention_forward.3} parent=1 // pred_check_branch
      %163 = sbr.rel (0) target = $region37
    $region36: #{attention_forward.3} parent=1 // pred_region
      _
    $region37: #{attention_forward.3} parent=1 // pred_fallthru
      _
    %164 = vsyncpa [#allocation4], 1
    %165 = vsyncpa [#allocation6], 1

// kernel: attention_forward.4
$region0: #{attention_forward.4}
  #allocation0 [shape = 'u32[]', space=smem, size = 0x4, offset = 0x4, fixed_abs, tag = 'smem constant byte address 0x4 - core index']
  #allocation1 [shape = 'u32[144,128]{1,0:T(1,128)}', space=vmem, size = 0x12000, scoped, tag = 'internal scratch']
  %s0 = inlined_call_operand.vmem [shape: f32[2,8,96], index: 0, kind: input, shape index: {}]
  %s1 = inlined_call_operand.vmem [shape: f32[2,8,32], index: 1, kind: output, shape index: {}]
  %s2 = sld [smem:[#allocation0]]
  $region37: #{attention_forward.4} parent=0
    _
  %s4 = ssub.s32 1, %s2
  %s5 = scalar_select 0, %s4, %s2
  loop: start=0, step=1, limit=4
  $region2: #{attention_forward.4} parent=0 // loop_pre_header
    _
  $region3: #{attention_forward.4} parent=0 // loop_header
    %s7 = sphi 0, %s11
    %p8 = scmp.ge.s32.totalorder %s7, 4
    %s17 = sphi 0, %s19
    %s20 = sphi 0, %s17
    %s21 = sphi 0, %s20
    %s37 = sphi 0, %s21
    %s43 = sphi 0, %s45
    %s46 = sphi 0, %s43
    %s47 = sphi 0, %s46
    %s63 = sphi 0, %s47
  $region4: #{attention_forward.4} parent=0 // loop_header_branch
    %10 = sbr.rel (%p8) target = $region8
  $region5: #{attention_forward.4} parent=0 // loop_body
    %s12 = ssub.s32 %s7, 1
    %s13 = ssub.s32 %s7, 2
    %s14 = sadd.s32 %s7, 1
    %s15 = ssub.s32 %s7, %s14
    %p16 = scmp.eq.s32.totalorder %s15, 0
    %s18 = sadd.s32 %s17, 1
    %s19 = scalar_select %p16, %s17, %s18
    %p22 = pneg %p16
    %p23 = scmp.eq.s32.totalorder %s7, 1
    %p24 = por %p22, %p23
    %p25 = scmp.ne.s32.totalorder %s17, %s20
    %p26 = scmp.eq.s32.totalorder %s7, 0
    %p27 = por %p25, %p26
    %p28 = scmp.ne.s32.totalorder %s17, %s20
    %p29 = scmp.eq.s32.totalorder %s12, 1
    %p30 = por %p28, %p29
    %p31 = scmp.ne.s32.totalorder %s20, %s21
    %p32 = scmp.eq.s32.totalorder %s12, 0
    %p33 = por %p31, %p32
    %p34 = scmp.ne.s32.totalorder %s20, %s21
    %p35 = scmp.eq.s32.totalorder %s13, 1
    %p36 = por %p34, %p35
    %p38 = scmp.ne.s32.totalorder %s21, %s37
    %p39 = scmp.eq.s32.totalorder %s13, 0
    %p40 = por %p38, %p39
    %s41 = ssub.s32 %s7, %s14
    %p42 = scmp.eq.s32.totalorder %s41, 0
    %s44 = sadd.s32 %s43, 1
    %s45 = scalar_select %p42, %s43, %s44
    %p48 = pneg %p42
    %p49 = scmp.eq.s32.totalorder %s7, 1
    %p50 = por %p48, %p49
    %p51 = scmp.ne.s32.totalorder %s43, %s46
    %p52 = scmp.eq.s32.totalorder %s7, 0
    %p53 = por %p51, %p52
    %p54 = scmp.ne.s32.totalorder %s43, %s46
    %p55 = scmp.eq.s32.totalorder %s12, 1
    %p56 = por %p54, %p55
    %p57 = scmp.ne.s32.totalorder %s46, %s47
    %p58 = scmp.eq.s32.totalorder %s12, 0
    %p59 = por %p57, %p58
    %p60 = scmp.ne.s32.totalorder %s46, %s47
    %p61 = scmp.eq.s32.totalorder %s13, 1
    %p62 = por %p60, %p61
    %p64 = scmp.ne.s32.totalorder %s47, %s63
    %p65 = scmp.eq.s32.totalorder %s13, 0
    %p66 = por %p64, %p65
    %p67 = scmp.le.s32.totalorder 1, %s7
    %p68 = scmp.lt.s32.totalorder %s7, 3
    %p69 = pnand %p67, %p68
    %p70 = pneg %p69
    // Predicated region
    $region9: #{attention_forward.4} parent=5 // pred_check
      _
    $region10: #{attention_forward.4} parent=5 // pred_check_branch
      %72 = sbr.rel (%p69) target = $region12
    $region11: #{attention_forward.4} parent=5 // pred_region
      %s73 = ssub.s32 %s7, 1
    $region12: #{attention_forward.4} parent=5 // pred_fallthru
      _
    %p74 = scmp.lt.s32.totalorder %s7, 2
    // Predicated region
    $region13: #{attention_forward.4} parent=5 // pred_check
      %p75 = pneg %p74
    $region14: #{attention_forward.4} parent=5 // pred_check_branch
      %77 = sbr.rel (%p75) target = $region16
    $region15: #{attention_forward.4} parent=5 // pred_region
      // Predicated region
      $region17: #{attention_forward.4} parent=15 // pred_check
        %p78 = pneg %p27
      $region18: #{attention_forward.4} parent=15 // pred_check_branch
        %80 = sbr.rel (%p78) target = $region20
      $region19: #{attention_forward.4} parent=15 // pred_region
        %p81 = scmp.lt.s32.totalorder %s7, 1
        %s82 = scalar_select %p81, %s7, 1
        %s83 = smul.addr %s82, 8
        %s84 = scalar_lea.vmem %s0, %s83
      $region20: #{attention_forward.4} parent=15 // pred_fallthru
        _
    $region16: #{attention_forward.4} parent=5 // pred_fallthru
      _
    %p85 = scmp.le.s32.totalorder 1, %s7
    %p86 = scmp.lt.s32.totalorder %s7, 3
    %p87 = pnand %p85, %p86
    %p88 = pneg %p87
    // Predicated region
    $region21: #{attention_forward.4} parent=5 // pred_check
      _
    $region22: #{attention_forward.4} parent=5 // pred_check_branch
      %90 = sbr.rel (%p87) target = $region24
    $region23: #{attention_forward.4} parent=5 // pred_region
      %s91 = ssub.s32 %s7, 1
      %p92 = scmp.lt.s32.totalorder %s12, 1
      %s93 = scalar_select %p92, %s12, 1
      %s94 = smul.addr %s93, 8
      %s95 = scalar_lea.vmem %s0, %s94
      %p96 = pneg %p33
      %p97 = pneg %p30
      %p98 = pneg %p59
      %p99 = pneg %p56
      %p100 = scmp.lt.s32.totalorder %s12, 1
      %s101 = scalar_select %p100, %s12, 1
      %s102 = smul.addr %s101, 8
      %s103 = scalar_lea.vmem %s1, %s102
      %p104 = scmp.lt.s32.totalorder %s12, 1
      %s105 = scalar_select %p104, %s12, 1
      %s106 = smul.addr %s105, 8
      %s107 = scalar_lea.vmem %s0, %s106
      %p108 = scmp.lt.s32.totalorder %s12, 1
      %s109 = scalar_select %p108, %s12, 1
      %s110 = smul.addr %s109, 8
      %s111 = scalar_lea.vmem %s1, %s110
      %v112 = vld [vmem:[%s107] sm:$0xff]
      %v113 = vmul.f32 %v112, 0.35355338
      %115 = vrot.lane.b32.xlu0 %v112, 96
      %v116 = vpop.permute.xlu0 %115
      %vm117 = vcmask 64512
      %v119 = vsel %vm117, %v113, 0
      %v121 = vsel %vm117, %v116, 0
      %123 = vmatprep.subr.mxu0 0.0
      %124 = vmatpush1.xpose.msra.mxu0 %v121
      %125 = vmatprep.subr.mxu0 0.0
      %126 = vmatpush1.xpose.msra.mxu0 0.0
      %127 = vmatprep.subr.mxu0 0.0
      %128 = vmatpush1.xpose.msra.mxu0 0.0
      %129 = vmatprep.subr.mxu0 0.0
      %130 = vmatpush1.xpose.msra.mxu0 0.0
      %131 = vmatprep.subr.mxu0 0.0
      %132 = vmatpush1.xpose.msra.mxu0 0.0
      %133 = vmatprep.subr.mxu0 0.0
      %134 = vmatpush1.xpose.msra.mxu0 0.0
      %135 = vmatprep.subr.mxu0 0.0
      %136 = vmatpush1.xpose.msra.mxu0 0.0
      %137 = vmatprep.subr.mxu0 0.0
      %138 = vmatpush1.xpose.msra.mxu0 0.0
      %139 = vmatprep.subr.mxu0 0.0
      %140 = vmatpush1.xpose.msra.mxu0 0.0
      %141 = vmatprep.subr.mxu0 0.0
      %142 = vmatpush1.xpose.msra.mxu0 0.0
      %143 = vmatprep.subr.mxu0 0.0
      %144 = vmatpush1.xpose.msra.mxu0 0.0
      %145 = vmatprep.subr.mxu0 0.0
      %146 = vmatpush1.xpose.msra.mxu0 0.0
      %147 = vmatprep.subr.mxu0 0.0
      %148 = vmatpush1.xpose.msra.mxu0 0.0
      %149 = vmatprep.subr.mxu0 0.0
      %150 = vmatpush1.xpose.msra.mxu0 0.0
      %151 = vmatprep.subr.mxu0 0.0
      %152 = vmatpush1.xpose.msra.mxu0 0.0
      %153 = vmatprep.subr.mxu0 0.0
      %154 = vmatpush1.xpose.msra.mxu0 0.0
      %155 = vmatprep.subr.mxu0 0.0
      %156 = vmatpush1.xpose.msra.mxu0 0.0
      %157 = vmatprep.subr.mxu0 0.0
      %158 = vmatpush1.xpose.msra.mxu0 0.0
      %159 = vmatprep.subr.mxu0 0.0
      %160 = vmatpush1.xpose.msra.mxu0 0.0
      %161 = vmatprep.subr.mxu0 0.0
      %162 = vmatpush1.xpose.msra.mxu0 0.0
      %163 = vmatprep.subr.mxu0 0.0
      %164 = vmatpush1.xpose.msra.mxu0 0.0
      %165 = vmatprep.subr.mxu0 0.0
      %166 = vmatpush1.xpose.msra.mxu0 0.0
      %167 = vmatprep.subr.mxu0 0.0
      %168 = vmatpush1.xpose.msra.mxu0 0.0
      %169 = vmatprep.subr.mxu0 0.0
      %170 = vmatpush1.xpose.msra.mxu0 0.0
      %171 = vmatprep.subr.mxu0 0.0
      %172 = vmatpush1.xpose.msra.mxu0 0.0
      %173 = vmatprep.subr.mxu0 0.0
      %174 = vmatpush1.xpose.msra.mxu0 0.0
      %175 = vmatprep.subr.mxu0 0.0
      %176 = vmatpush1.xpose.msra.mxu0 0.0
      %177 = vmatprep.subr.mxu0 0.0
      %178 = vmatpush1.xpose.msra.mxu0 0.0
      %179 = vmatprep.subr.mxu0 0.0
      %180 = vmatpush1.xpose.msra.mxu0 0.0
      %181 = vmatprep.subr.mxu0 0.0
      %182 = vmatpush1.xpose.msra.mxu0 0.0
      %183 = vmatprep.subr.mxu0 0.0
      %184 = vmatpush1.xpose.msra.mxu0 0.0
      %185 = vmatprep.subr.mxu0 0.0
      %186 = vmatpush1.xpose.msra.mxu0 0.0
      %187 = vmatprep.mubr.f32.mxu0 0.0
      %188 = vmatmul.mubr.f32.gmra.mrb[0].mxu0 %v119
      %v189 = vpop.f32.mrb[0].mxu0
      %v190 = vadd.f32 0.0, %v189
      %v191 = vpop.f32.mrb[0].mxu0
      %192 = vdwg.mxu0
      %v193 = vsel %vm117, %v190, -inf
      %194 = vmax.xlane.f32.xlu0 %v193
      %v195 = vpop.xlane.xlu0 %194
      %v196 = vsub.f32 %v190, %v195
      %v197 = vmul.f32 %v196, 1.442695
      %v198 = vpow.pop %v197
      %v199 = vsel %vm117, %v198, 0.0
      %200 = vadd.xlane.f32.xlu0 %v199
      %v201 = vpop.xlane.xlu0 %200
      %202 = vrot.lane.b32.xlu0 %v112, 64
      %v203 = vpop.permute.xlu0 %202
      %v206 = vsel %vm117, %v198, 0
      %208 = vmatprep.subr.mxu0 0.0
      %209 = vmatpush1.msra.mxu0 %v203
      %210 = vmatprep.subr.mxu0 0.0
      %211 = vmatpush1.msra.mxu0 0.0
      %212 = vmatprep.subr.mxu0 0.0
      %213 = vmatpush1.msra.mxu0 0.0
      %214 = vmatprep.subr.mxu0 0.0
      %215 = vmatpush1.msra.mxu0 0.0
      %216 = vmatprep.subr.mxu0 0.0
      %217 = vmatpush1.msra.mxu0 0.0
      %218 = vmatprep.subr.mxu0 0.0
      %219 = vmatpush1.msra.mxu0 0.0
      %220 = vmatprep.subr.mxu0 0.0
      %221 = vmatpush1.msra.mxu0 0.0
      %222 = vmatprep.subr.mxu0 0.0
      %223 = vmatpush1.msra.mxu0 0.0
      %224 = vmatprep.subr.mxu0 0.0
      %225 = vmatpush1.msra.mxu0 0.0
      %226 = vmatprep.subr.mxu0 0.0
      %227 = vmatpush1.msra.mxu0 0.0
      %228 = vmatprep.subr.mxu0 0.0
      %229 = vmatpush1.msra.mxu0 0.0
      %230 = vmatprep.subr.mxu0 0.0
      %231 = vmatpush1.msra.mxu0 0.0
      %232 = vmatprep.subr.mxu0 0.0
      %233 = vmatpush1.msra.mxu0 0.0
      %234 = vmatprep.subr.mxu0 0.0
      %235 = vmatpush1.msra.mxu0 0.0
      %236 = vmatprep.subr.mxu0 0.0
      %237 = vmatpush1.msra.mxu0 0.0
      %238 = vmatprep.subr.mxu0 0.0
      %239 = vmatpush1.msra.mxu0 0.0
      %240 = vmatprep.subr.mxu0 0.0
      %241 = vmatpush1.msra.mxu0 0.0
      %242 = vmatprep.subr.mxu0 0.0
      %243 = vmatpush1.msra.mxu0 0.0
      %244 = vmatprep.subr.mxu0 0.0
      %245 = vmatpush1.msra.mxu0 0.0
      %246 = vmatprep.subr.mxu0 0.0
      %247 = vmatpush1.msra.mxu0 0.0
      %248 = vmatprep.subr.mxu0 0.0
      %249 = vmatpush1.msra.mxu0 0.0
      %250 = vmatprep.subr.mxu0 0.0
      %251 = vmatpush1.msra.mxu0 0.0
      %252 = vmatprep.subr.mxu0 0.0
      %253 = vmatpush1.msra.mxu0 0.0
      %254 = vmatprep.subr.mxu0 0.0
      %255 = vmatpush1.msra.mxu0 0.0
      %256 = vmatprep.subr.mxu0 0.0
      %257 = vmatpush1.msra.mxu0 0.0
      %258 = vmatprep.subr.mxu0 0.0
      %259 = vmatpush1.msra.mxu0 0.0
      %260 = vmatprep.subr.mxu0 0.0
      %261 = vmatpush1.msra.mxu0 0.0
      %262 = vmatprep.subr.mxu0 0.0
      %263 = vmatpush1.msra.mxu0 0.0
      %264 = vmatprep.subr.mxu0 0.0
      %265 = vmatpush1.msra.mxu0 0.0
      %266 = vmatprep.subr.mxu0 0.0
      %267 = vmatpush1.msra.mxu0 0.0
      %268 = vmatprep.subr.mxu0 0.0
      %269 = vmatpush1.msra.mxu0 0.0
      %270 = vmatprep.subr.mxu0 0.0
      %271 = vmatpush1.msra.mxu0 0.0
      %272 = vmatprep.mubr.f32.mxu0 0.0
      %273 = vmatmul.mubr.f32.gmra.mrb[0].mxu0 %v206
      %v274 = vpop.f32.mrb[0].mxu0
      %v275 = vadd.f32 0.0, %v274
      %v276 = vpop.f32.mrb[0].mxu0
      %277 = vdwg.mxu0
      %v278 = vrcp.pop %v201
      %v279 = vmul.f32 %v275, %v278
      %280 = vrot.lane.b32.xlu0 %v113, 120
      %v281 = vpop.permute.xlu0 %280
      %282 = vrot.lane.b32.xlu0 %v112, 88
      %v283 = vpop.permute.xlu0 %282
      %v284 = vsel %vm117, %v281, 0
      %v286 = vsel %vm117, %v283, 0
      %288 = vmatprep.subr.mxu0 0.0
      %289 = vmatpush1.xpose.msra.mxu0 %v286
      %290 = vmatprep.subr.mxu0 0.0
      %291 = vmatpush1.xpose.msra.mxu0 0.0
      %292 = vmatprep.subr.mxu0 0.0
      %293 = vmatpush1.xpose.msra.mxu0 0.0
      %294 = vmatprep.subr.mxu0 0.0
      %295 = vmatpush1.xpose.msra.mxu0 0.0
      %296 = vmatprep.subr.mxu0 0.0
      %297 = vmatpush1.xpose.msra.mxu0 0.0
      %298 = vmatprep.subr.mxu0 0.0
      %299 = vmatpush1.xpose.msra.mxu0 0.0
      %300 = vmatprep.subr.mxu0 0.0
      %301 = vmatpush1.xpose.msra.mxu0 0.0
      %302 = vmatprep.subr.mxu0 0.0
      %303 = vmatpush1.xpose.msra.mxu0 0.0
      %304 = vmatprep.subr.mxu0 0.0
      %305 = vmatpush1.xpose.msra.mxu0 0.0
      %306 = vmatprep.subr.mxu0 0.0
      %307 = vmatpush1.xpose.msra.mxu0 0.0
      %308 = vmatprep.subr.mxu0 0.0
      %309 = vmatpush1.xpose.msra.mxu0 0.0
      %310 = vmatprep.subr.mxu0 0.0
      %311 = vmatpush1.xpose.msra.mxu0 0.0
      %312 = vmatprep.subr.mxu0 0.0
      %313 = vmatpush1.xpose.msra.mxu0 0.0
      %314 = vmatprep.subr.mxu0 0.0
      %315 = vmatpush1.xpose.msra.mxu0 0.0
      %316 = vmatprep.subr.mxu0 0.0
      %317 = vmatpush1.xpose.msra.mxu0 0.0
      %318 = vmatprep.subr.mxu0 0.0
      %319 = vmatpush1.xpose.msra.mxu0 0.0
      %320 = vmatprep.subr.mxu0 0.0
      %321 = vmatpush1.xpose.msra.mxu0 0.0
      %322 = vmatprep.subr.mxu0 0.0
      %323 = vmatpush1.xpose.msra.mxu0 0.0
      %324 = vmatprep.subr.mxu0 0.0
      %325 = vmatpush1.xpose.msra.mxu0 0.0
      %326 = vmatprep.subr.mxu0 0.0
      %327 = vmatpush1.xpose.msra.mxu0 0.0
      %328 = vmatprep.subr.mxu0 0.0
      %329 = vmatpush1.xpose.msra.mxu0 0.0
      %330 = vmatprep.subr.mxu0 0.0
      %331 = vmatpush1.xpose.msra.mxu0 0.0
      %332 = vmatprep.subr.mxu0 0.0
      %333 = vmatpush1.xpose.msra.mxu0 0.0
      %334 = vmatprep.subr.mxu0 0.0
      %335 = vmatpush1.xpose.msra.mxu0 0.0
      %336 = vmatprep.subr.mxu0 0.0
      %337 = vmatpush1.xpose.msra.mxu0 0.0
      %338 = vmatprep.subr.mxu0 0.0
      %339 = vmatpush1.xpose.msra.mxu0 0.0
      %340 = vmatprep.subr.mxu0 0.0
      %341 = vmatpush1.xpose.msra.mxu0 0.0
      %342 = vmatprep.subr.mxu0 0.0
      %343 = vmatpush1.xpose.msra.mxu0 0.0
      %344 = vmatprep.subr.mxu0 0.0
      %345 = vmatpush1.xpose.msra.mxu0 0.0
      %346 = vmatprep.subr.mxu0 0.0
      %347 = vmatpush1.xpose.msra.mxu0 0.0
      %348 = vmatprep.subr.mxu0 0.0
      %349 = vmatpush1.xpose.msra.mxu0 0.0
      %350 = vmatprep.subr.mxu0 0.0
      %351 = vmatpush1.xpose.msra.mxu0 0.0
      %352 = vmatprep.mubr.f32.mxu0 0.0
      %353 = vmatmul.mubr.f32.gmra.mrb[0].mxu0 %v284
      %v354 = vpop.f32.mrb[0].mxu0
      %v355 = vadd.f32 0.0, %v354
      %v356 = vpop.f32.mrb[0].mxu0
      %357 = vdwg.mxu0
      %v358 = vsel %vm117, %v355, -inf
      %359 = vmax.xlane.f32.xlu0 %v358
      %v360 = vpop.xlane.xlu0 %359
      %v361 = vsub.f32 %v355, %v360
      %v362 = vmul.f32 %v361, 1.442695
      %v363 = vpow.pop %v362
      %v364 = vsel %vm117, %v363, 0.0
      %365 = vadd.xlane.f32.xlu0 %v364
      %v366 = vpop.xlane.xlu0 %365
      %367 = vrot.lane.b32.xlu0 %v112, 56
      %v368 = vpop.permute.xlu0 %367
      %v371 = vsel %vm117, %v363, 0
      %373 = vmatprep.subr.mxu0 0.0
      %374 = vmatpush1.msra.mxu0 %v368
      %375 = vmatprep.subr.mxu0 0.0
      %376 = vmatpush1.msra.mxu0 0.0
      %377 = vmatprep.subr.mxu0 0.0
      %378 = vmatpush1.msra.mxu0 0.0
      %379 = vmatprep.subr.mxu0 0.0
      %380 = vmatpush1.msra.mxu0 0.0
      %381 = vmatprep.subr.mxu0 0.0
      %382 = vmatpush1.msra.mxu0 0.0
      %383 = vmatprep.subr.mxu0 0.0
      %384 = vmatpush1.msra.mxu0 0.0
      %385 = vmatprep.subr.mxu0 0.0
      %386 = vmatpush1.msra.mxu0 0.0
      %387 = vmatprep.subr.mxu0 0.0
      %388 = vmatpush1.msra.mxu0 0.0
      %389 = vmatprep.subr.mxu0 0.0
      %390 = vmatpush1.msra.mxu0 0.0
      %391 = vmatprep.subr.mxu0 0.0
      %392 = vmatpush1.msra.mxu0 0.0
      %393 = vmatprep.subr.mxu0 0.0
      %394 = vmatpush1.msra.mxu0 0.0
      %395 = vmatprep.subr.mxu0 0.0
      %396 = vmatpush1.msra.mxu0 0.0
      %397 = vmatprep.subr.mxu0 0.0
      %398 = vmatpush1.msra.mxu0 0.0
      %399 = vmatprep.subr.mxu0 0.0
      %400 = vmatpush1.msra.mxu0 0.0
      %401 = vmatprep.subr.mxu0 0.0
      %402 = vmatpush1.msra.mxu0 0.0
      %403 = vmatprep.subr.mxu0 0.0
      %404 = vmatpush1.msra.mxu0 0.0
      %405 = vmatprep.subr.mxu0 0.0
      %406 = vmatpush1.msra.mxu0 0.0
      %407 = vmatprep.subr.mxu0 0.0
      %408 = vmatpush1.msra.mxu0 0.0
      %409 = vmatprep.subr.mxu0 0.0
      %410 = vmatpush1.msra.mxu0 0.0
      %411 = vmatprep.subr.mxu0 0.0
      %412 = vmatpush1.msra.mxu0 0.0
      %413 = vmatprep.subr.mxu0 0.0
      %414 = vmatpush1.msra.mxu0 0.0
      %415 = vmatprep.subr.mxu0 0.0
      %416 = vmatpush1.msra.mxu0 0.0
      %417 = vmatprep.subr.mxu0 0.0
      %418 = vmatpush1.msra.mxu0 0.0
      %419 = vmatprep.subr.mxu0 0.0
      %420 = vmatpush1.msra.mxu0 0.0
      %421 = vmatprep.subr.mxu0 0.0
      %422 = vmatpush1.msra.mxu0 0.0
      %423 = vmatprep.subr.mxu0 0.0
      %424 = vmatpush1.msra.mxu0 0.0
      %425 = vmatprep.subr.mxu0 0.0
      %426 = vmatpush1.msra.mxu0 0.0
      %427 = vmatprep.subr.mxu0 0.0
      %428 = vmatpush1.msra.mxu0 0.0
      %429 = vmatprep.subr.mxu0 0.0
      %430 = vmatpush1.msra.mxu0 0.0
      %431 = vmatprep.subr.mxu0 0.0
      %432 = vmatpush1.msra.mxu0 0.0
      %433 = vmatprep.subr.mxu0 0.0
      %434 = vmatpush1.msra.mxu0 0.0
      %435 = vmatprep.subr.mxu0 0.0
      %436 = vmatpush1.msra.mxu0 0.0
      %437 = vmatprep.mubr.f32.mxu0 0.0
      %438 = vmatmul.mubr.f32.gmra.mrb[0].mxu0 %v371
      %v439 = vpop.f32.mrb[0].mxu0
      %v440 = vadd.f32 0.0, %v439
      %v441 = vpop.f32.mrb[0].mxu0
      %442 = vdwg.mxu0
      %v443 = vrcp.pop %v366
      %v444 = vmul.f32 %v440, %v443
      %445 = vrot.lane.b32.xlu0 %v113, 112
      %v446 = vpop.permute.xlu0 %445
      %447 = vrot.lane.b32.xlu0 %v112, 80
      %v448 = vpop.permute.xlu0 %447
      %v449 = vsel %vm117, %v446, 0
      %v451 = vsel %vm117, %v448, 0
      %453 = vmatprep.subr.mxu0 0.0
      %454 = vmatpush1.xpose.msra.mxu0 %v451
      %455 = vmatprep.subr.mxu0 0.0
      %456 = vmatpush1.xpose.msra.mxu0 0.0
      %457 = vmatprep.subr.mxu0 0.0
      %458 = vmatpush1.xpose.msra.mxu0 0.0
      %459 = vmatprep.subr.mxu0 0.0
      %460 = vmatpush1.xpose.msra.mxu0 0.0
      %461 = vmatprep.subr.mxu0 0.0
      %462 = vmatpush1.xpose.msra.mxu0 0.0
      %463 = vmatprep.subr.mxu0 0.0
      %464 = vmatpush1.xpose.msra.mxu0 0.0
      %465 = vmatprep.subr.mxu0 0.0
      %466 = vmatpush1.xpose.msra.mxu0 0.0
      %467 = vmatprep.subr.mxu0 0.0
      %468 = vmatpush1.xpose.msra.mxu0 0.0
      %469 = vmatprep.subr.mxu0 0.0
      %470 = vmatpush1.xpose.msra.mxu0 0.0
      %471 = vmatprep.subr.mxu0 0.0
      %472 = vmatpush1.xpose.msra.mxu0 0.0
      %473 = vmatprep.subr.mxu0 0.0
      %474 = vmatpush1.xpose.msra.mxu0 0.0
      %475 = vmatprep.subr.mxu0 0.0
      %476 = vmatpush1.xpose.msra.mxu0 0.0
      %477 = vmatprep.subr.mxu0 0.0
      %478 = vmatpush1.xpose.msra.mxu0 0.0
      %479 = vmatprep.subr.mxu0 0.0
      %480 = vmatpush1.xpose.msra.mxu0 0.0
      %481 = vmatprep.subr.mxu0 0.0
      %482 = vmatpush1.xpose.msra.mxu0 0.0
      %483 = vmatprep.subr.mxu0 0.0
      %484 = vmatpush1.xpose.msra.mxu0 0.0
      %485 = vmatprep.subr.mxu0 0.0
      %486 = vmatpush1.xpose.msra.mxu0 0.0
      %487 = vmatprep.subr.mxu0 0.0
      %488 = vmatpush1.xpose.msra.mxu0 0.0
      %489 = vmatprep.subr.mxu0 0.0
      %490 = vmatpush1.xpose.msra.mxu0 0.0
      %491 = vmatprep.subr.mxu0 0.0
      %492 = vmatpush1.xpose.msra.mxu0 0.0
      %493 = vmatprep.subr.mxu0 0.0
      %494 = vmatpush1.xpose.msra.mxu0 0.0
      %495 = vmatprep.subr.mxu0 0.0
      %496 = vmatpush1.xpose.msra.mxu0 0.0
      %497 = vmatprep.subr.mxu0 0.0
      %498 = vmatpush1.xpose.msra.mxu0 0.0
      %499 = vmatprep.subr.mxu0 0.0
      %500 = vmatpush1.xpose.msra.mxu0 0.0
      %501 = vmatprep.subr.mxu0 0.0
      %502 = vmatpush1.xpose.msra.mxu0 0.0
      %503 = vmatprep.subr.mxu0 0.0
      %504 = vmatpush1.xpose.msra.mxu0 0.0
      %505 = vmatprep.subr.mxu0 0.0
      %506 = vmatpush1.xpose.msra.mxu0 0.0
      %507 = vmatprep.subr.mxu0 0.0
      %508 = vmatpush1.xpose.msra.mxu0 0.0
      %509 = vmatprep.subr.mxu0 0.0
      %510 = vmatpush1.xpose.msra.mxu0 0.0
      %511 = vmatprep.subr.mxu0 0.0
      %512 = vmatpush1.xpose.msra.mxu0 0.0
      %513 = vmatprep.subr.mxu0 0.0
      %514 = vmatpush1.xpose.msra.mxu0 0.0
      %515 = vmatprep.subr.mxu0 0.0
      %516 = vmatpush1.xpose.msra.mxu0 0.0
      %517 = vmatprep.mubr.f32.mxu0 0.0
      %518 = vmatmul.mubr.f32.gmra.mrb[0].mxu0 %v449
      %v519 = vpop.f32.mrb[0].mxu0
      %v520 = vadd.f32 0.0, %v519
      %v521 = vpop.f32.mrb[0].mxu0
      %522 = vdwg.mxu0
      %v523 = vsel %vm117, %v520, -inf
      %524 = vmax.xlane.f32.xlu0 %v523
      %v525 = vpop.xlane.xlu0 %524
      %v526 = vsub.f32 %v520, %v525
      %v527 = vmul.f32 %v526, 1.442695
      %v528 = vpow.pop %v527
      %v529 = vsel %vm117, %v528, 0.0
      %530 = vadd.xlane.f32.xlu0 %v529
      %v531 = vpop.xlane.xlu0 %530
      %532 = vrot.lane.b32.xlu0 %v112, 48
      %v533 = vpop.permute.xlu0 %532
      %v536 = vsel %vm117, %v528, 0
      %538 = vmatprep.subr.mxu0 0.0
      %539 = vmatpush1.msra.mxu0 %v533
      %540 = vmatprep.subr.mxu0 0.0
      %541 = vmatpush1.msra.mxu0 0.0
      %542 = vmatprep.subr.mxu0 0.0
      %543 = vmatpush1.msra.mxu0 0.0
      %544 = vmatprep.subr.mxu0 0.0
      %545 = vmatpush1.msra.mxu0 0.0
      %546 = vmatprep.subr.mxu0 0.0
      %547 = vmatpush1.msra.mxu0 0.0
      %548 = vmatprep.subr.mxu0 0.0
      %549 = vmatpush1.msra.mxu0 0.0
      %550 = vmatprep.subr.mxu0 0.0
      %551 = vmatpush1.msra.mxu0 0.0
      %552 = vmatprep.subr.mxu0 0.0
      %553 = vmatpush1.msra.mxu0 0.0
      %554 = vmatprep.subr.mxu0 0.0
      %555 = vmatpush1.msra.mxu0 0.0
      %556 = vmatprep.subr.mxu0 0.0
      %557 = vmatpush1.msra.mxu0 0.0
      %558 = vmatprep.subr.mxu0 0.0
      %559 = vmatpush1.msra.mxu0 0.0
      %560 = vmatprep.subr.mxu0 0.0
      %561 = vmatpush1.msra.mxu0 0.0
      %562 = vmatprep.subr.mxu0 0.0
      %563 = vmatpush1.msra.mxu0 0.0
      %564 = vmatprep.subr.mxu0 0.0
      %565 = vmatpush1.msra.mxu0 0.0
      %566 = vmatprep.subr.mxu0 0.0
      %567 = vmatpush1.msra.mxu0 0.0
      %568 = vmatprep.subr.mxu0 0.0
      %569 = vmatpush1.msra.mxu0 0.0
      %570 = vmatprep.subr.mxu0 0.0
      %571 = vmatpush1.msra.mxu0 0.0
      %572 = vmatprep.subr.mxu0 0.0
      %573 = vmatpush1.msra.mxu0 0.0
      %574 = vmatprep.subr.mxu0 0.0
      %575 = vmatpush1.msra.mxu0 0.0
      %576 = vmatprep.subr.mxu0 0.0
      %577 = vmatpush1.msra.mxu0 0.0
      %578 = vmatprep.subr.mxu0 0.0
      %579 = vmatpush1.msra.mxu0 0.0
      %580 = vmatprep.subr.mxu0 0.0
      %581 = vmatpush1.msra.mxu0 0.0
      %582 = vmatprep.subr.mxu0 0.0
      %583 = vmatpush1.msra.mxu0 0.0
      %584 = vmatprep.subr.mxu0 0.0
      %585 = vmatpush1.msra.mxu0 0.0
      %586 = vmatprep.subr.mxu0 0.0
      %587 = vmatpush1.msra.mxu0 0.0
      %588 = vmatprep.subr.mxu0 0.0
      %589 = vmatpush1.msra.mxu0 0.0
      %590 = vmatprep.subr.mxu0 0.0
      %591 = vmatpush1.msra.mxu0 0.0
      %592 = vmatprep.subr.mxu0 0.0
      %593 = vmatpush1.msra.mxu0 0.0
      %594 = vmatprep.subr.mxu0 0.0
      %595 = vmatpush1.msra.mxu0 0.0
      %596 = vmatprep.subr.mxu0 0.0
      %597 = vmatpush1.msra.mxu0 0.0
      %598 = vmatprep.subr.mxu0 0.0
      %599 = vmatpush1.msra.mxu0 0.0
      %600 = vmatprep.subr.mxu0 0.0
      %601 = vmatpush1.msra.mxu0 0.0
      %602 = vmatprep.mubr.f32.mxu0 0.0
      %603 = vmatmul.mubr.f32.gmra.mrb[0].mxu0 %v536
      %v604 = vpop.f32.mrb[0].mxu0
      %v605 = vadd.f32 0.0, %v604
      %v606 = vpop.f32.mrb[0].mxu0
      %607 = vdwg.mxu0
      %v608 = vrcp.pop %v531
      %v609 = vmul.f32 %v605, %v608
      %610 = vrot.lane.b32.xlu0 %v113, 104
      %v611 = vpop.permute.xlu0 %610
      %612 = vrot.lane.b32.xlu0 %v112, 72
      %v613 = vpop.permute.xlu0 %612
      %v614 = vsel %vm117, %v611, 0
      %v616 = vsel %vm117, %v613, 0
      %618 = vmatprep.subr.mxu0 0.0
      %619 = vmatpush1.xpose.msra.mxu0 %v616
      %620 = vmatprep.subr.mxu0 0.0
      %621 = vmatpush1.xpose.msra.mxu0 0.0
      %622 = vmatprep.subr.mxu0 0.0
      %623 = vmatpush1.xpose.msra.mxu0 0.0
      %624 = vmatprep.subr.mxu0 0.0
      %625 = vmatpush1.xpose.msra.mxu0 0.0
      %626 = vmatprep.subr.mxu0 0.0
      %627 = vmatpush1.xpose.msra.mxu0 0.0
      %628 = vmatprep.subr.mxu0 0.0
      %629 = vmatpush1.xpose.msra.mxu0 0.0
      %630 = vmatprep.subr.mxu0 0.0
      %631 = vmatpush1.xpose.msra.mxu0 0.0
      %632 = vmatprep.subr.mxu0 0.0
      %633 = vmatpush1.xpose.msra.mxu0 0.0
      %634 = vmatprep.subr.mxu0 0.0
      %635 = vmatpush1.xpose.msra.mxu0 0.0
      %636 = vmatprep.subr.mxu0 0.0
      %637 = vmatpush1.xpose.msra.mxu0 0.0
      %638 = vmatprep.subr.mxu0 0.0
      %639 = vmatpush1.xpose.msra.mxu0 0.0
      %640 = vmatprep.subr.mxu0 0.0
      %641 = vmatpush1.xpose.msra.mxu0 0.0
      %642 = vmatprep.subr.mxu0 0.0
      %643 = vmatpush1.xpose.msra.mxu0 0.0
      %644 = vmatprep.subr.mxu0 0.0
      %645 = vmatpush1.xpose.msra.mxu0 0.0
      %646 = vmatprep.subr.mxu0 0.0
      %647 = vmatpush1.xpose.msra.mxu0 0.0
      %648 = vmatprep.subr.mxu0 0.0
      %649 = vmatpush1.xpose.msra.mxu0 0.0
      %650 = vmatprep.subr.mxu0 0.0
      %651 = vmatpush1.xpose.msra.mxu0 0.0
      %652 = vmatprep.subr.mxu0 0.0
      %653 = vmatpush1.xpose.msra.mxu0 0.0
      %654 = vmatprep.subr.mxu0 0.0
      %655 = vmatpush1.xpose.msra.mxu0 0.0
      %656 = vmatprep.subr.mxu0 0.0
      %657 = vmatpush1.xpose.msra.mxu0 0.0
      %658 = vmatprep.subr.mxu0 0.0
      %659 = vmatpush1.xpose.msra.mxu0 0.0
      %660 = vmatprep.subr.mxu0 0.0
      %661 = vmatpush1.xpose.msra.mxu0 0.0
      %662 = vmatprep.subr.mxu0 0.0
      %663 = vmatpush1.xpose.msra.mxu0 0.0
      %664 = vmatprep.subr.mxu0 0.0
      %665 = vmatpush1.xpose.msra.mxu0 0.0
      %666 = vmatprep.subr.mxu0 0.0
      %667 = vmatpush1.xpose.msra.mxu0 0.0
      %668 = vmatprep.subr.mxu0 0.0
      %669 = vmatpush1.xpose.msra.mxu0 0.0
      %670 = vmatprep.subr.mxu0 0.0
      %671 = vmatpush1.xpose.msra.mxu0 0.0
      %672 = vmatprep.subr.mxu0 0.0
      %673 = vmatpush1.xpose.msra.mxu0 0.0
      %674 = vmatprep.subr.mxu0 0.0
      %675 = vmatpush1.xpose.msra.mxu0 0.0
      %676 = vmatprep.subr.mxu0 0.0
      %677 = vmatpush1.xpose.msra.mxu0 0.0
      %678 = vmatprep.subr.mxu0 0.0
      %679 = vmatpush1.xpose.msra.mxu0 0.0
      %680 = vmatprep.subr.mxu0 0.0
      %681 = vmatpush1.xpose.msra.mxu0 0.0
      %682 = vmatprep.mubr.f32.mxu0 0.0
      %683 = vmatmul.mubr.f32.gmra.mrb[0].mxu0 %v614
      %v684 = vpop.f32.mrb[0].mxu0
      %v685 = vadd.f32 0.0, %v684
      %v686 = vpop.f32.mrb[0].mxu0
      %687 = vdwg.mxu0
      %v688 = vsel %vm117, %v685, -inf
      %689 = vmax.xlane.f32.xlu0 %v688
      %v690 = vpop.xlane.xlu0 %689
      %v691 = vsub.f32 %v685, %v690
      %v692 = vmul.f32 %v691, 1.442695
      %v693 = vpow.pop %v692
      %v694 = vsel %vm117, %v693, 0.0
      %695 = vadd.xlane.f32.xlu0 %v694
      %v696 = vpop.xlane.xlu0 %695
      %697 = vrot.lane.b32.xlu0 %v112, 40
      %v698 = vpop.permute.xlu0 %697
      %v701 = vsel %vm117, %v693, 0
      %703 = vmatprep.subr.mxu0 0.0
      %704 = vmatpush1.msra.mxu0 %v698
      %705 = vmatprep.subr.mxu0 0.0
      %706 = vmatpush1.msra.mxu0 0.0
      %707 = vmatprep.subr.mxu0 0.0
      %708 = vmatpush1.msra.mxu0 0.0
      %709 = vmatprep.subr.mxu0 0.0
      %710 = vmatpush1.msra.mxu0 0.0
      %711 = vmatprep.subr.mxu0 0.0
      %712 = vmatpush1.msra.mxu0 0.0
      %713 = vmatprep.subr.mxu0 0.0
      %714 = vmatpush1.msra.mxu0 0.0
      %715 = vmatprep.subr.mxu0 0.0
      %716 = vmatpush1.msra.mxu0 0.0
      %717 = vmatprep.subr.mxu0 0.0
      %718 = vmatpush1.msra.mxu0 0.0
      %719 = vmatprep.subr.mxu0 0.0
      %720 = vmatpush1.msra.mxu0 0.0
      %721 = vmatprep.subr.mxu0 0.0
      %722 = vmatpush1.msra.mxu0 0.0
      %723 = vmatprep.subr.mxu0 0.0
      %724 = vmatpush1.msra.mxu0 0.0
      %725 = vmatprep.subr.mxu0 0.0
      %726 = vmatpush1.msra.mxu0 0.0
      %727 = vmatprep.subr.mxu0 0.0
      %728 = vmatpush1.msra.mxu0 0.0
      %729 = vmatprep.subr.mxu0 0.0
      %730 = vmatpush1.msra.mxu0 0.0
      %731 = vmatprep.subr.mxu0 0.0
      %732 = vmatpush1.msra.mxu0 0.0
      %733 = vmatprep.subr.mxu0 0.0
      %734 = vmatpush1.msra.mxu0 0.0
      %735 = vmatprep.subr.mxu0 0.0
      %736 = vmatpush1.msra.mxu0 0.0
      %737 = vmatprep.subr.mxu0 0.0
      %738 = vmatpush1.msra.mxu0 0.0
      %739 = vmatprep.subr.mxu0 0.0
      %740 = vmatpush1.msra.mxu0 0.0
      %741 = vmatprep.subr.mxu0 0.0
      %742 = vmatpush1.msra.mxu0 0.0
      %743 = vmatprep.subr.mxu0 0.0
      %744 = vmatpush1.msra.mxu0 0.0
      %745 = vmatprep.subr.mxu0 0.0
      %746 = vmatpush1.msra.mxu0 0.0
      %747 = vmatprep.subr.mxu0 0.0
      %748 = vmatpush1.msra.mxu0 0.0
      %749 = vmatprep.subr.mxu0 0.0
      %750 = vmatpush1.msra.mxu0 0.0
      %751 = vmatprep.subr.mxu0 0.0
      %752 = vmatpush1.msra.mxu0 0.0
      %753 = vmatprep.subr.mxu0 0.0
      %754 = vmatpush1.msra.mxu0 0.0
      %755 = vmatprep.subr.mxu0 0.0
      %756 = vmatpush1.msra.mxu0 0.0
      %757 = vmatprep.subr.mxu0 0.0
      %758 = vmatpush1.msra.mxu0 0.0
      %759 = vmatprep.subr.mxu0 0.0
      %760 = vmatpush1.msra.mxu0 0.0
      %761 = vmatprep.subr.mxu0 0.0
      %762 = vmatpush1.msra.mxu0 0.0
      %763 = vmatprep.subr.mxu0 0.0
      %764 = vmatpush1.msra.mxu0 0.0
      %765 = vmatprep.subr.mxu0 0.0
      %766 = vmatpush1.msra.mxu0 0.0
      %767 = vmatprep.mubr.f32.mxu0 0.0
      %768 = vmatmul.mubr.f32.gmra.mrb[0].mxu0 %v701
      %v769 = vpop.f32.mrb[0].mxu0
      %v770 = vadd.f32 0.0, %v769
      %v771 = vpop.f32.mrb[0].mxu0
      %772 = vdwg.mxu0
      %v773 = vrcp.pop %v696
      %v774 = vmul.f32 %v770, %v773
      %776 = vrot.lane.b32.xlu0 %v444, 8
      %v777 = vpop.permute.xlu0 %776
      %780 = vrot.lane.b32.xlu0 %v609, 16
      %v781 = vpop.permute.xlu0 %780
      %784 = vrot.lane.b32.xlu0 %v774, 24
      %v785 = vpop.permute.xlu0 %784
      %v787 = vsel %vm117, %v279, %v777
      %vm788 = vcmask 130048
      %v789 = vsel %vm788, %v787, %v781
      %vm790 = vcmask 195584
      %v791 = vsel %vm790, %v789, %v785
      %vm792 = vcmask 261120
      %793 = vst.msk [vmem:[%s111] sm:$0xff] %vm792, %v791
      %p794 = scmp.lt.s32.totalorder %s12, 1
      %s795 = scalar_select %p794, %s12, 1
      %s796 = smul.addr %s795, 8
      %s797 = scalar_lea.vmem %s1, %s796
      // Predicated region
      $region25: #{attention_forward.4} parent=23 // pred_check
        %p798 = pneg %p56
      $region26: #{attention_forward.4} parent=23 // pred_check_branch
        %800 = sbr.rel (%p798) target = $region28
      $region27: #{attention_forward.4} parent=23 // pred_region
        _
      $region28: #{attention_forward.4} parent=23 // pred_fallthru
        _
    $region24: #{attention_forward.4} parent=5 // pred_fallthru
      _
    %p801 = scmp.le.s32.totalorder 2, %s7
    // Predicated region
    $region29: #{attention_forward.4} parent=5 // pred_check
      %p802 = pneg %p801
    $region30: #{attention_forward.4} parent=5 // pred_check_branch
      %804 = sbr.rel (%p802) target = $region32
    $region31: #{attention_forward.4} parent=5 // pred_region
      %s805 = ssub.s32 %s7, 2
      // Predicated region
      $region33: #{attention_forward.4} parent=31 // pred_check
        %p806 = pneg %p62
      $region34: #{attention_forward.4} parent=31 // pred_check_branch
        %808 = sbr.rel (%p806) target = $region36
      $region35: #{attention_forward.4} parent=31 // pred_region
        %p809 = scmp.lt.s32.totalorder %s13, 1
        %s810 = scalar_select %p809, %s13, 1
        %s811 = smul.addr %s810, 8
        %s812 = scalar_lea.vmem %s1, %s811
      $region36: #{attention_forward.4} parent=31 // pred_fallthru
        _
    $region32: #{attention_forward.4} parent=5 // pred_fallthru
      _
  $region6: #{attention_forward.4} parent=0 // loop_footer
    %s11 = sadd.s32 1, %s7
  $region7: #{attention_forward.4} parent=0 // loop_footer_branch
    %6 = sbr.rel target = $region3
  $region8: #{attention_forward.4} parent=0 // loop_exit
    _

</llo_original>
